<compile_context>
chip_gen: v6e
topology: v6e:2x2x1
jax: 0.10.0
libtpu: 0.0.40
codegen_flags: <defaults>
</compile_context>

<pallas_src>
import jax
import jax.numpy as jnp
from jax import lax
from jax.experimental import pallas as pl
from jax.experimental.pallas import tpu as pltpu

_EPS = 1e-12


# ------------------------------ Pallas kernel -------------------------------
def _sn_linear_fused_kernel(u_ref, z_ref, w_ref, b_ref, o_ref, u_new_ref):
    """o = (z @ W^T) / sigma(W) + b, sigma from one power-iteration step.

    u_ref     : (1, F)  bf16  power-iteration state (left singular vec estimate)
    z_ref     : (tm, Z) bf16  latent batch tile
    w_ref     : (Z, F)  bf16  weight, pre-transposed (in_features, out_features)
    b_ref     : (1, F)  f32   bias
    o_ref     : (tm, F) f32   output tile
    u_new_ref : (1, F)  f32   updated power-iteration state
    """
    w = w_ref[...]

    # ---- spectral norm: 1 power-iteration step on the VMEM-resident W ----
    # v = normalize(W^T u); with w = W^T stored as (Z, F) this contracts over F
    # (lhs (1, F) x rhs (Z, F), contracting last dims -- flash-attn pattern).
    v = lax.dot_general(u_ref[...], w, (((1,), (1,)), ((), ())),
                        preferred_element_type=jnp.float32)             # (1, Z)
    v = v / jnp.maximum(jnp.sqrt(jnp.sum(v * v, axis=1, keepdims=True)), _EPS)
    # wv = W v  (as a row): (1, Z) @ (Z, F)
    wv = jnp.dot(v.astype(jnp.bfloat16), w,
                 preferred_element_type=jnp.float32)                    # (1, F)
    u_new = wv / jnp.maximum(
        jnp.sqrt(jnp.sum(wv * wv, axis=1, keepdims=True)), _EPS)
    sigma = jnp.sum(u_new * wv, axis=1, keepdims=True)                  # (1, 1)
    inv_sigma = 1.0 / sigma
    u_new_ref[...] = u_new

    # ---- main matmul + epilogue (bf16 MXU, f32 accumulate / scale / bias) ----
    acc = jnp.dot(z_ref[...], w, preferred_element_type=jnp.float32)    # (tm, F)
    o_ref[...] = (acc * inv_sigma + b_ref[...]).astype(o_ref.dtype)


# ------------------------------- jitted forward ------------------------------
@jax.jit
def _gen_ini_block_forward(w_bf16, bias, u, z):
    """Returns (act0 (B, C, 4, 4) f32, updated u (1, F) f32)."""
    B, Z = z.shape
    Zw, F = w_bf16.shape
    assert Z == Zw, (Z, Zw)
    # Whole bf16 weight stays resident in VMEM for the fused sigma + matmul.
    assert Z * F * 2 <= 8 * 1024 * 1024, (
        "TODO(synk): tile F/K for weights larger than VMEM")

    tm = B if B <= 256 else 256          # batch tile; lane dim F stays full
    grid = (pl.cdiv(B, tm),)

    out, u_new = pl.pallas_call(
        _sn_linear_fused_kernel,
        out_shape=(jax.ShapeDtypeStruct((B, F), jnp.float32),
                   jax.ShapeDtypeStruct((1, F), jnp.float32)),
        grid_spec=pl.GridSpec(
            grid=grid,
            in_specs=[
                pl.BlockSpec((1, F), lambda i: (0, 0)),    # u        (resident)
                pl.BlockSpec((tm, Z), lambda i: (i, 0)),   # z batch tile
                pl.BlockSpec((Zw, F), lambda i: (0, 0)),   # weight   (resident)
                pl.BlockSpec((1, F), lambda i: (0, 0)),    # bias     (resident)
            ],
            out_specs=[
                pl.BlockSpec((tm, F), lambda i: (i, 0)),   # lane-dense output
                pl.BlockSpec((1, F), lambda i: (0, 0)),    # updated u
            ],
        ),
        compiler_params=pltpu.CompilerParams(
            # The u_new block is revisited across batch tiles -> "arbitrary".
            dimension_semantics=("arbitrary",),
        ),
    )(u.astype(jnp.bfloat16), z.astype(jnp.bfloat16), w_bf16,
      bias.reshape(1, F).astype(jnp.float32))

    return out.reshape(B, F // 16, 4, 4), u_new   # F = C*4*4 -> free NCHW view


# ----------------------------------- module ---------------------------------
class GenIniBlockPallas:
    """JAX/Pallas re-implementation of GenIniBlock.forward (add_noise=False)."""

    def __init__(self, z_dim, out_channels, key, add_noise=False):
        assert not add_noise, "TODO(synk): reference never defines self.noise0"
        self.z_dim = z_dim
        self.out_channels = out_channels
        out_features = out_channels * 4 * 4
        kw, kb, ku = jax.random.split(key, 3)
        w_f32 = jax.random.normal(kw, (z_dim, out_features), jnp.float32) * 0.02
        # Persistent bf16 copy fed to the kernel; an f32 master would only be
        # needed by an optimizer.  Stored pre-transposed (Z, F): no per-call
        # transpose op.
        self.weight_t = w_f32.astype(jnp.bfloat16)
        self.bias = jax.random.normal(kb, (out_features,), jnp.float32) * 0.02
        u0 = jax.random.normal(ku, (1, out_features), jnp.float32)
        self.u = u0 / jnp.maximum(jnp.linalg.norm(u0), _EPS)   # (1, F) f32

    def __call__(self, z):
        act0, u_new = _gen_ini_block_forward(self.weight_t, self.bias, self.u, z)
        self.u = u_new   # persist power-iteration state (torch training mode)
        return act0


# ------------------------------- plain-JAX reference -------------------------
def _reference_forward(w_bf16, bias, u, z):
    """Same math as the kernel in plain JAX, with identical bf16 roundings."""
    P = lax.Precision.HIGHEST
    hi = lambda x: x.astype(jnp.float32)
    w = hi(w_bf16)
    v = jnp.dot(hi(u.astype(jnp.bfloat16)), w.T, precision=P)           # (1, Z)
    v = v / jnp.maximum(jnp.sqrt(jnp.sum(v * v, axis=1, keepdims=True)), _EPS)
    wv = jnp.dot(hi(v.astype(jnp.bfloat16)), w, precision=P)            # (1, F)
    u_new = wv / jnp.maximum(
        jnp.sqrt(jnp.sum(wv * wv, axis=1, keepdims=True)), _EPS)
    sigma = jnp.sum(u_new * wv, axis=1, keepdims=True)
    acc = jnp.dot(hi(z.astype(jnp.bfloat16)), w, precision=P)
    out = acc * (1.0 / sigma) + bias.reshape(1, -1)
    B, F = out.shape
    return out.reshape(B, F // 16, 4, 4), u_new


# ------------------------------------ main -----------------------------------
if __name__ == "__main__":
    key = jax.random.PRNGKey(0)
    k_param, k_z = jax.random.split(key)

    z_dim = 128
    conv_dim = 8
    out_channels = conv_dim * 16        # Generator.block0: conv_dim*16 -> F=2048
    batch = 8

    block = GenIniBlockPallas(z_dim, out_channels, k_param)
    z = jax.random.normal(k_z, (batch, z_dim), jnp.float32)

    u_before = block.u                  # snapshot (block() updates the u state)
    out = block(z)
    jax.block_until_ready(out)

    ref, ref_u = _reference_forward(block.weight_t, block.bias, u_before, z)

    assert out.shape == (batch, out_channels, 4, 4), out.shape
    assert block.u.shape == (1, out_channels * 16), block.u.shape
    max_err = float(jnp.max(jnp.abs(out - ref)))
    assert jnp.allclose(out, ref, atol=5e-3, rtol=5e-3), max_err
    assert jnp.allclose(block.u, ref_u, atol=5e-3, rtol=5e-3)

    print("KERNEL_OK")
</pallas_src>

<mosaic_0001>
module attributes {stable_mosaic.version = 11 : i64} {
  func.func @_sn_linear_fused_kernel(%arg0: i32, %arg1: memref<1x2048xbf16, #tpu.memory_space<vmem>>, %arg2: memref<8x128xbf16, #tpu.memory_space<vmem>>, %arg3: memref<128x2048xbf16, #tpu.memory_space<vmem>>, %arg4: memref<1x2048xf32, #tpu.memory_space<vmem>>, %arg5: memref<8x2048xf32, #tpu.memory_space<vmem>>, %arg6: memref<1x2048xf32, #tpu.memory_space<vmem>>) attributes {dimension_semantics = [#tpu.dimension_semantics<arbitrary>], iteration_bounds = array<i64: 1>, scalar_prefetch = 0 : i64, scratch_operands = 0 : i64, tpu.core_type = #tpu.core_type<tc>, window_params = [{pipeline_mode = #tpu.pipeline_mode<synchronous>, transform_indices = @transform_0, window_bounds = array<i64: 1, 2048>}, {transform_indices = @transform_1, window_bounds = array<i64: 8, 128>}, {pipeline_mode = #tpu.pipeline_mode<synchronous>, transform_indices = @transform_2, window_bounds = array<i64: 128, 2048>}, {pipeline_mode = #tpu.pipeline_mode<synchronous>, transform_indices = @transform_3, window_bounds = array<i64: 1, 2048>}, {transform_indices = @transform_4, window_bounds = array<i64: 8, 2048>}, {pipeline_mode = #tpu.pipeline_mode<synchronous>, transform_indices = @transform_5, window_bounds = array<i64: 1, 2048>}]} {
    %c0 = arith.constant 0 : index
    %c0_0 = arith.constant 0 : index
    %0 = vector.load %arg3[%c0, %c0_0] : memref<128x2048xbf16, #tpu.memory_space<vmem>>, vector<128x2048xbf16>
    %c0_1 = arith.constant 0 : index
    %c0_2 = arith.constant 0 : index
    %1 = vector.load %arg1[%c0_1, %c0_2] : memref<1x2048xbf16, #tpu.memory_space<vmem>>, vector<1x2048xbf16>
    %cst = arith.constant dense<0.000000e+00> : vector<1x128xf32>
    %2 = tpu.matmul %1, %0, %cst {dimension_numbers = #tpu.dot_dimension_numbers<[1], [1], [0], [0], [0, 0, 1, 0], [], []>} : vector<1x2048xbf16>, vector<128x2048xbf16>, vector<1x128xf32> -> vector<1x128xf32>
    %3 = arith.mulf %2, %2 : vector<1x128xf32>
    %cst_3 = arith.constant dense<0.000000e+00> : vector<1xf32>
    %4 = vector.multi_reduction <add>, %3, %cst_3 [1] : vector<1x128xf32> to vector<1xf32>
    %5 = vector.shape_cast %4 : vector<1xf32> to vector<1x1xf32>
    %6 = math.sqrt %5 : vector<1x1xf32>
    %cst_4 = arith.constant 9.99999996E-13 : f32
    %7 = vector.broadcast %cst_4 : f32 to vector<1x1xf32>
    %8 = arith.maximumf %6, %7 : vector<1x1xf32>
    %9 = vector.broadcast %8 : vector<1x1xf32> to vector<1x128xf32>
    %10 = arith.divf %2, %9 : vector<1x128xf32>
    %11 = arith.truncf %10 : vector<1x128xf32> to vector<1x128xbf16>
    %cst_5 = arith.constant dense<0.000000e+00> : vector<1x2048xf32>
    %12 = tpu.matmul %11, %0, %cst_5 {dimension_numbers = #tpu.dot_dimension_numbers<[1], [0], [0], [1], [0, 0, 1, 1], [], []>} : vector<1x128xbf16>, vector<128x2048xbf16>, vector<1x2048xf32> -> vector<1x2048xf32>
    %13 = arith.mulf %12, %12 : vector<1x2048xf32>
    %cst_6 = arith.constant dense<0.000000e+00> : vector<1xf32>
    %14 = vector.multi_reduction <add>, %13, %cst_6 [1] : vector<1x2048xf32> to vector<1xf32>
    %15 = vector.shape_cast %14 : vector<1xf32> to vector<1x1xf32>
    %16 = math.sqrt %15 : vector<1x1xf32>
    %cst_7 = arith.constant 9.99999996E-13 : f32
    %17 = vector.broadcast %cst_7 : f32 to vector<1x1xf32>
    %18 = arith.maximumf %16, %17 : vector<1x1xf32>
    %19 = vector.broadcast %18 : vector<1x1xf32> to vector<1x2048xf32>
    %20 = arith.divf %12, %19 : vector<1x2048xf32>
    %21 = arith.mulf %20, %12 : vector<1x2048xf32>
    %cst_8 = arith.constant dense<0.000000e+00> : vector<1xf32>
    %22 = vector.multi_reduction <add>, %21, %cst_8 [1] : vector<1x2048xf32> to vector<1xf32>
    %23 = vector.shape_cast %22 : vector<1xf32> to vector<1x1xf32>
    %cst_9 = arith.constant 1.000000e+00 : f32
    %24 = vector.broadcast %cst_9 : f32 to vector<1x1xf32>
    %25 = arith.divf %24, %23 : vector<1x1xf32>
    %c0_10 = arith.constant 0 : index
    %c0_11 = arith.constant 0 : index
    %26 = vector.load %arg6[%c0_10, %c0_11] : memref<1x2048xf32, #tpu.memory_space<vmem>>, vector<1x2048xf32>
    tpu.vector_store %arg6[%c0_10, %c0_11], %20 {strides = array<i32>} : memref<1x2048xf32, #tpu.memory_space<vmem>>, vector<1x2048xf32>,
    %c0_12 = arith.constant 0 : index
    %c0_13 = arith.constant 0 : index
    %27 = vector.load %arg2[%c0_12, %c0_13] : memref<8x128xbf16, #tpu.memory_space<vmem>>, vector<8x128xbf16>
    %cst_14 = arith.constant dense<0.000000e+00> : vector<8x2048xf32>
    %28 = tpu.matmul %27, %0, %cst_14 {dimension_numbers = #tpu.dot_dimension_numbers<[1], [0], [0], [1], [0, 0, 1, 1], [], []>} : vector<8x128xbf16>, vector<128x2048xbf16>, vector<8x2048xf32> -> vector<8x2048xf32>
    %29 = vector.broadcast %25 : vector<1x1xf32> to vector<8x2048xf32>
    %30 = arith.mulf %28, %29 : vector<8x2048xf32>
    %c0_15 = arith.constant 0 : index
    %c0_16 = arith.constant 0 : index
    %31 = vector.load %arg4[%c0_15, %c0_16] : memref<1x2048xf32, #tpu.memory_space<vmem>>, vector<1x2048xf32>
    %32 = vector.broadcast %31 : vector<1x2048xf32> to vector<8x2048xf32>
    %33 = arith.addf %30, %32 : vector<8x2048xf32>
    %c0_17 = arith.constant 0 : index
    %c0_18 = arith.constant 0 : index
    %34 = vector.load %arg5[%c0_17, %c0_18] : memref<8x2048xf32, #tpu.memory_space<vmem>>, vector<8x2048xf32>
    tpu.vector_store %arg5[%c0_17, %c0_18], %33 {strides = array<i32>} : memref<8x2048xf32, #tpu.memory_space<vmem>>, vector<8x2048xf32>,
    return
  }
  func.func @transform_0(%arg0: i32) -> (i32, i32) {
    %c0_i32 = arith.constant 0 : i32
    %c0_i32_0 = arith.constant 0 : i32
    %c0_i32_1 = arith.constant 0 : i32
    return %c0_i32, %c0_i32_0 : i32, i32
  }
  func.func @transform_1(%arg0: i32) -> (i32, i32) {
    %c0_i32 = arith.constant 0 : i32
    %c0_i32_0 = arith.constant 0 : i32
    return %arg0, %c0_i32 : i32, i32
  }
  func.func @transform_2(%arg0: i32) -> (i32, i32) {
    %c0_i32 = arith.constant 0 : i32
    %c0_i32_0 = arith.constant 0 : i32
    %c0_i32_1 = arith.constant 0 : i32
    return %c0_i32, %c0_i32_0 : i32, i32
  }
  func.func @transform_3(%arg0: i32) -> (i32, i32) {
    %c0_i32 = arith.constant 0 : i32
    %c0_i32_0 = arith.constant 0 : i32
    %c0_i32_1 = arith.constant 0 : i32
    return %c0_i32, %c0_i32_0 : i32, i32
  }
  func.func @transform_4(%arg0: i32) -> (i32, i32) {
    %c0_i32 = arith.constant 0 : i32
    %c0_i32_0 = arith.constant 0 : i32
    return %arg0, %c0_i32 : i32, i32
  }
  func.func @transform_5(%arg0: i32) -> (i32, i32) {
    %c0_i32 = arith.constant 0 : i32
    %c0_i32_0 = arith.constant 0 : i32
    %c0_i32_1 = arith.constant 0 : i32
    return %c0_i32, %c0_i32_0 : i32, i32
  }
}

</mosaic_0001>

<llo_original>
// kernel: _gen_ini_block_forward.1
$region0: #{_gen_ini_block_forward.1}
  #allocation0 [shape = 'u32[]', space=smem, size = 0x4, offset = 0x4, fixed_abs, tag = 'smem constant byte address 0x4 - core index']
  #allocation1 [shape = 'u32[144,128]{1,0:T(1,128)}', space=vmem, size = 0x12000, scoped, tag = 'internal scratch']
  %s0 = inlined_call_operand.vmem [shape: bf16[1,2048], index: 0, kind: input, shape index: {}]
  %s1 = inlined_call_operand.vmem [shape: bf16[8,128], index: 1, kind: input, shape index: {}]
  %s2 = inlined_call_operand.hbm [shape: bf16[128,2048], index: 2, kind: input, shape index: {}]
  %s3 = inlined_call_operand.vmem [shape: f32[1,2048], index: 3, kind: input, shape index: {}]
  %s4 = inlined_call_operand.vmem [shape: f32[8,2048], index: 4, kind: output, shape index: {0}]
  %s5 = inlined_call_operand.hbm [shape: f32[1,2048], index: 5, kind: output, shape index: {1}]
  %6 = xla_tuple %s4, %s5
  %s7 = sld [smem:[#allocation0]]
  $region38: #{_gen_ini_block_forward.1} parent=0
    _
  %s9 = ssub.s32 1, %s7
  %s10 = scalar_select 0, %s9, %s7
  $region1: #{_gen_ini_block_forward.1} parent=0
    #allocation2 [shape = 'u8[524288]{0}', space=vmem, size = 0x80000, scoped, tag = 'input window, operand 2, single buffered']
    #allocation3 [shape = 's32[1]{0}', space=sflag, size = 0x4, scoped, tag = 'scoped memory for _gen_ini_block_forward.1']
    #allocation4 [shape = 's32[1]{0}', space=sflag, size = 0x4, scoped, tag = 'scoped memory for _gen_ini_block_forward.1']
    #allocation5 [shape = 'u8[8192]{0}', space=vmem, size = 0x2000, scoped, tag = 'output window, operand 1, single buffered']
    %11 = vsyncpa [#allocation3], 0
    %12 = vsyncpa [#allocation4], 0
    // Predicated region
    $region2: #{_gen_ini_block_forward.1} parent=1 // pred_check
      _
    $region3: #{_gen_ini_block_forward.1} parent=1 // pred_check_branch
      %14 = sbr.rel (0) target = $region5
    $region4: #{_gen_ini_block_forward.1} parent=1 // pred_region
      _
    $region5: #{_gen_ini_block_forward.1} parent=1 // pred_fallthru
      _
    // Predicated region
    $region6: #{_gen_ini_block_forward.1} parent=1 // pred_check
      _
    $region7: #{_gen_ini_block_forward.1} parent=1 // pred_check_branch
      %16 = sbr.rel (0) target = $region9
    $region8: #{_gen_ini_block_forward.1} parent=1 // pred_region
      _
    $region9: #{_gen_ini_block_forward.1} parent=1 // pred_fallthru
      _
    // Predicated region
    $region10: #{_gen_ini_block_forward.1} parent=1 // pred_check
      _
    $region11: #{_gen_ini_block_forward.1} parent=1 // pred_check_branch
      %18 = sbr.rel (0) target = $region13
    $region12: #{_gen_ini_block_forward.1} parent=1 // pred_region
      %s20 = ssub.s32 16384, 16384
      %21 = vsyncadd [#allocation3], %s20
      %s22 = sshll.u32 [#allocation2], 4
      %s23 = int_to_ptr.vmem [resolvable:$true] %s22
      %28 = dma.hbm_to_vmem [thread:$0]  %s2, 16384, %s23, [#allocation3], 1024, 1024, 64
    $region13: #{_gen_ini_block_forward.1} parent=1 // pred_fallthru
      _
    // Predicated region
    $region14: #{_gen_ini_block_forward.1} parent=1 // pred_check
      _
    $region15: #{_gen_ini_block_forward.1} parent=1 // pred_check_branch
      %30 = sbr.rel (0) target = $region17
    $region16: #{_gen_ini_block_forward.1} parent=1 // pred_region
      _
    $region17: #{_gen_ini_block_forward.1} parent=1 // pred_fallthru
      _
    // Predicated region
    $region18: #{_gen_ini_block_forward.1} parent=1 // pred_check
      _
    $region19: #{_gen_ini_block_forward.1} parent=1 // pred_check_branch
      %32 = sbr.rel (0) target = $region21
    $region20: #{_gen_ini_block_forward.1} parent=1 // pred_region
      %33 = dma.done [#allocation3], 16384
    $region21: #{_gen_ini_block_forward.1} parent=1 // pred_fallthru
      _
    %v35 = vld [vmem:[#allocation2] sm:$0xff]
    %v36 = vld [vmem:[#allocation2 + $0x8] sm:$0xff]
    %v37 = vld [vmem:[#allocation2 + $0x10] sm:$0xff]
    %v38 = vld [vmem:[#allocation2 + $0x18] sm:$0xff]
    %v39 = vld [vmem:[#allocation2 + $0x20] sm:$0xff]
    %v40 = vld [vmem:[#allocation2 + $0x28] sm:$0xff]
    %v41 = vld [vmem:[#allocation2 + $0x30] sm:$0xff]
    %v42 = vld [vmem:[#allocation2 + $0x38] sm:$0xff]
    %v43 = vld [vmem:[#allocation2 + $0x40] sm:$0xff]
    %v44 = vld [vmem:[#allocation2 + $0x48] sm:$0xff]
    %v45 = vld [vmem:[#allocation2 + $0x50] sm:$0xff]
    %v46 = vld [vmem:[#allocation2 + $0x58] sm:$0xff]
    %v47 = vld [vmem:[#allocation2 + $0x60] sm:$0xff]
    %v48 = vld [vmem:[#allocation2 + $0x68] sm:$0xff]
    %v49 = vld [vmem:[#allocation2 + $0x70] sm:$0xff]
    %v50 = vld [vmem:[#allocation2 + $0x78] sm:$0xff]
    %v51 = vld [vmem:[#allocation2 + $0x80] sm:$0xff]
    %v52 = vld [vmem:[#allocation2 + $0x88] sm:$0xff]
    %v53 = vld [vmem:[#allocation2 + $0x90] sm:$0xff]
    %v54 = vld [vmem:[#allocation2 + $0x98] sm:$0xff]
    %v55 = vld [vmem:[#allocation2 + $0xa0] sm:$0xff]
    %v56 = vld [vmem:[#allocation2 + $0xa8] sm:$0xff]
    %v57 = vld [vmem:[#allocation2 + $0xb0] sm:$0xff]
    %v58 = vld [vmem:[#allocation2 + $0xb8] sm:$0xff]
    %v59 = vld [vmem:[#allocation2 + $0xc0] sm:$0xff]
    %v60 = vld [vmem:[#allocation2 + $0xc8] sm:$0xff]
    %v61 = vld [vmem:[#allocation2 + $0xd0] sm:$0xff]
    %v62 = vld [vmem:[#allocation2 + $0xd8] sm:$0xff]
    %v63 = vld [vmem:[#allocation2 + $0xe0] sm:$0xff]
    %v64 = vld [vmem:[#allocation2 + $0xe8] sm:$0xff]
    %v65 = vld [vmem:[#allocation2 + $0xf0] sm:$0xff]
    %v66 = vld [vmem:[#allocation2 + $0xf8] sm:$0xff]
    %v67 = vld [vmem:[#allocation2 + $0x100] sm:$0xff]
    %v68 = vld [vmem:[#allocation2 + $0x108] sm:$0xff]
    %v69 = vld [vmem:[#allocation2 + $0x110] sm:$0xff]
    %v70 = vld [vmem:[#allocation2 + $0x118] sm:$0xff]
    %v71 = vld [vmem:[#allocation2 + $0x120] sm:$0xff]
    %v72 = vld [vmem:[#allocation2 + $0x128] sm:$0xff]
    %v73 = vld [vmem:[#allocation2 + $0x130] sm:$0xff]
    %v74 = vld [vmem:[#allocation2 + $0x138] sm:$0xff]
    %v75 = vld [vmem:[#allocation2 + $0x140] sm:$0xff]
    %v76 = vld [vmem:[#allocation2 + $0x148] sm:$0xff]
    %v77 = vld [vmem:[#allocation2 + $0x150] sm:$0xff]
    %v78 = vld [vmem:[#allocation2 + $0x158] sm:$0xff]
    %v79 = vld [vmem:[#allocation2 + $0x160] sm:$0xff]
    %v80 = vld [vmem:[#allocation2 + $0x168] sm:$0xff]
    %v81 = vld [vmem:[#allocation2 + $0x170] sm:$0xff]
    %v82 = vld [vmem:[#allocation2 + $0x178] sm:$0xff]
    %v83 = vld [vmem:[#allocation2 + $0x180] sm:$0xff]
    %v84 = vld [vmem:[#allocation2 + $0x188] sm:$0xff]
    %v85 = vld [vmem:[#allocation2 + $0x190] sm:$0xff]
    %v86 = vld [vmem:[#allocation2 + $0x198] sm:$0xff]
    %v87 = vld [vmem:[#allocation2 + $0x1a0] sm:$0xff]
    %v88 = vld [vmem:[#allocation2 + $0x1a8] sm:$0xff]
    %v89 = vld [vmem:[#allocation2 + $0x1b0] sm:$0xff]
    %v90 = vld [vmem:[#allocation2 + $0x1b8] sm:$0xff]
    %v91 = vld [vmem:[#allocation2 + $0x1c0] sm:$0xff]
    %v92 = vld [vmem:[#allocation2 + $0x1c8] sm:$0xff]
    %v93 = vld [vmem:[#allocation2 + $0x1d0] sm:$0xff]
    %v94 = vld [vmem:[#allocation2 + $0x1d8] sm:$0xff]
    %v95 = vld [vmem:[#allocation2 + $0x1e0] sm:$0xff]
    %v96 = vld [vmem:[#allocation2 + $0x1e8] sm:$0xff]
    %v97 = vld [vmem:[#allocation2 + $0x1f0] sm:$0xff]
    %v98 = vld [vmem:[#allocation2 + $0x1f8] sm:$0xff]
    %v99 = vld [vmem:[#allocation2 + $0x200] sm:$0xff]
    %v100 = vld [vmem:[#allocation2 + $0x208] sm:$0xff]
    %v101 = vld [vmem:[#allocation2 + $0x210] sm:$0xff]
    %v102 = vld [vmem:[#allocation2 + $0x218] sm:$0xff]
    %v103 = vld [vmem:[#allocation2 + $0x220] sm:$0xff]
    %v104 = vld [vmem:[#allocation2 + $0x228] sm:$0xff]
    %v105 = vld [vmem:[#allocation2 + $0x230] sm:$0xff]
    %v106 = vld [vmem:[#allocation2 + $0x238] sm:$0xff]
    %v107 = vld [vmem:[#allocation2 + $0x240] sm:$0xff]
    %v108 = vld [vmem:[#allocation2 + $0x248] sm:$0xff]
    %v109 = vld [vmem:[#allocation2 + $0x250] sm:$0xff]
    %v110 = vld [vmem:[#allocation2 + $0x258] sm:$0xff]
    %v111 = vld [vmem:[#allocation2 + $0x260] sm:$0xff]
    %v112 = vld [vmem:[#allocation2 + $0x268] sm:$0xff]
    %v113 = vld [vmem:[#allocation2 + $0x270] sm:$0xff]
    %v114 = vld [vmem:[#allocation2 + $0x278] sm:$0xff]
    %v115 = vld [vmem:[#allocation2 + $0x280] sm:$0xff]
    %v116 = vld [vmem:[#allocation2 + $0x288] sm:$0xff]
    %v117 = vld [vmem:[#allocation2 + $0x290] sm:$0xff]
    %v118 = vld [vmem:[#allocation2 + $0x298] sm:$0xff]
    %v119 = vld [vmem:[#allocation2 + $0x2a0] sm:$0xff]
    %v120 = vld [vmem:[#allocation2 + $0x2a8] sm:$0xff]
    %v121 = vld [vmem:[#allocation2 + $0x2b0] sm:$0xff]
    %v122 = vld [vmem:[#allocation2 + $0x2b8] sm:$0xff]
    %v123 = vld [vmem:[#allocation2 + $0x2c0] sm:$0xff]
    %v124 = vld [vmem:[#allocation2 + $0x2c8] sm:$0xff]
    %v125 = vld [vmem:[#allocation2 + $0x2d0] sm:$0xff]
    %v126 = vld [vmem:[#allocation2 + $0x2d8] sm:$0xff]
    %v127 = vld [vmem:[#allocation2 + $0x2e0] sm:$0xff]
    %v128 = vld [vmem:[#allocation2 + $0x2e8] sm:$0xff]
    %v129 = vld [vmem:[#allocation2 + $0x2f0] sm:$0xff]
    %v130 = vld [vmem:[#allocation2 + $0x2f8] sm:$0xff]
    %v131 = vld [vmem:[#allocation2 + $0x300] sm:$0xff]
    %v132 = vld [vmem:[#allocation2 + $0x308] sm:$0xff]
    %v133 = vld [vmem:[#allocation2 + $0x310] sm:$0xff]
    %v134 = vld [vmem:[#allocation2 + $0x318] sm:$0xff]
    %v135 = vld [vmem:[#allocation2 + $0x320] sm:$0xff]
    %v136 = vld [vmem:[#allocation2 + $0x328] sm:$0xff]
    %v137 = vld [vmem:[#allocation2 + $0x330] sm:$0xff]
    %v138 = vld [vmem:[#allocation2 + $0x338] sm:$0xff]
    %v139 = vld [vmem:[#allocation2 + $0x340] sm:$0xff]
    %v140 = vld [vmem:[#allocation2 + $0x348] sm:$0xff]
    %v141 = vld [vmem:[#allocation2 + $0x350] sm:$0xff]
    %v142 = vld [vmem:[#allocation2 + $0x358] sm:$0xff]
    %v143 = vld [vmem:[#allocation2 + $0x360] sm:$0xff]
    %v144 = vld [vmem:[#allocation2 + $0x368] sm:$0xff]
    %v145 = vld [vmem:[#allocation2 + $0x370] sm:$0xff]
    %v146 = vld [vmem:[#allocation2 + $0x378] sm:$0xff]
    %v147 = vld [vmem:[#allocation2 + $0x380] sm:$0xff]
    %v148 = vld [vmem:[#allocation2 + $0x388] sm:$0xff]
    %v149 = vld [vmem:[#allocation2 + $0x390] sm:$0xff]
    %v150 = vld [vmem:[#allocation2 + $0x398] sm:$0xff]
    %v151 = vld [vmem:[#allocation2 + $0x3a0] sm:$0xff]
    %v152 = vld [vmem:[#allocation2 + $0x3a8] sm:$0xff]
    %v153 = vld [vmem:[#allocation2 + $0x3b0] sm:$0xff]
    %v154 = vld [vmem:[#allocation2 + $0x3b8] sm:$0xff]
    %v155 = vld [vmem:[#allocation2 + $0x3c0] sm:$0xff]
    %v156 = vld [vmem:[#allocation2 + $0x3c8] sm:$0xff]
    %v157 = vld [vmem:[#allocation2 + $0x3d0] sm:$0xff]
    %v158 = vld [vmem:[#allocation2 + $0x3d8] sm:$0xff]
    %v159 = vld [vmem:[#allocation2 + $0x3e0] sm:$0xff]
    %v160 = vld [vmem:[#allocation2 + $0x3e8] sm:$0xff]
    %v161 = vld [vmem:[#allocation2 + $0x3f0] sm:$0xff]
    %v162 = vld [vmem:[#allocation2 + $0x3f8] sm:$0xff]
    %v163 = vld [vmem:[%s0] sm:$0xff]
    %v164 = vld [vmem:[%s0 + $0x8] sm:$0xff]
    %v167 = vcombine.high %v163, %v163
    %v169 = vunpack.c.l.s4 1966171168
    %v170 = vunpack.c.0.s8 %v169
    %v171 = vlaneseq
    %v172 = vshrl.u32 %v171, 7
    %v173 = vsub.s32 %v170, %v172
    %v174 = vrot.slane %v163, %v173
    %v176 = vunpack.c.l.s4 1966171168
    %v177 = vunpack.c.0.s8 %v176
    %v178 = vlaneseq
    %v179 = vshrl.u32 %v178, 7
    %v180 = vsub.s32 %v177, %v179
    %v181 = vrot.slane %v167, %v180
    %v182 = vcombine.high %v174, %v174
    %v183 = vcombine.high %v181, %v181
    %v185 = vunpack.c.l.s4 1966171168
    %v186 = vunpack.c.0.s8 %v185
    %v187 = vlaneseq
    %v188 = vshrl.u32 %v187, 7
    %v189 = vsub.s32 %v186, %v188
    %v190 = vrot.slane %v174, %v189
    %v192 = vunpack.c.l.s4 1966171168
    %v193 = vunpack.c.0.s8 %v192
    %v194 = vlaneseq
    %v195 = vshrl.u32 %v194, 7
    %v196 = vsub.s32 %v193, %v195
    %v197 = vrot.slane %v181, %v196
    %v199 = vunpack.c.l.s4 1966171168
    %v200 = vunpack.c.0.s8 %v199
    %v201 = vlaneseq
    %v202 = vshrl.u32 %v201, 7
    %v203 = vsub.s32 %v200, %v202
    %v204 = vrot.slane %v182, %v203
    %v206 = vunpack.c.l.s4 1966171168
    %v207 = vunpack.c.0.s8 %v206
    %v208 = vlaneseq
    %v209 = vshrl.u32 %v208, 7
    %v210 = vsub.s32 %v207, %v209
    %v211 = vrot.slane %v183, %v210
    %v212 = vcombine.high %v190, %v190
    %v213 = vcombine.high %v197, %v197
    %v214 = vcombine.high %v204, %v204
    %v215 = vcombine.high %v211, %v211
    %v216 = vcombine.high %v164, %v164
    %v218 = vunpack.c.l.s4 1966171168
    %v219 = vunpack.c.0.s8 %v218
    %v220 = vlaneseq
    %v221 = vshrl.u32 %v220, 7
    %v222 = vsub.s32 %v219, %v221
    %v223 = vrot.slane %v164, %v222
    %v225 = vunpack.c.l.s4 1966171168
    %v226 = vunpack.c.0.s8 %v225
    %v227 = vlaneseq
    %v228 = vshrl.u32 %v227, 7
    %v229 = vsub.s32 %v226, %v228
    %v230 = vrot.slane %v216, %v229
    %v231 = vcombine.high %v223, %v223
    %v232 = vcombine.high %v230, %v230
    %v234 = vunpack.c.l.s4 1966171168
    %v235 = vunpack.c.0.s8 %v234
    %v236 = vlaneseq
    %v237 = vshrl.u32 %v236, 7
    %v238 = vsub.s32 %v235, %v237
    %v239 = vrot.slane %v223, %v238
    %v241 = vunpack.c.l.s4 1966171168
    %v242 = vunpack.c.0.s8 %v241
    %v243 = vlaneseq
    %v244 = vshrl.u32 %v243, 7
    %v245 = vsub.s32 %v242, %v244
    %v246 = vrot.slane %v230, %v245
    %v248 = vunpack.c.l.s4 1966171168
    %v249 = vunpack.c.0.s8 %v248
    %v250 = vlaneseq
    %v251 = vshrl.u32 %v250, 7
    %v252 = vsub.s32 %v249, %v251
    %v253 = vrot.slane %v231, %v252
    %v255 = vunpack.c.l.s4 1966171168
    %v256 = vunpack.c.0.s8 %v255
    %v257 = vlaneseq
    %v258 = vshrl.u32 %v257, 7
    %v259 = vsub.s32 %v256, %v258
    %v260 = vrot.slane %v232, %v259
    %v261 = vcombine.high %v239, %v239
    %v262 = vcombine.high %v246, %v246
    %v263 = vcombine.high %v253, %v253
    %v264 = vcombine.high %v260, %v260
    %v409 = vunpack.c.l.b16 %v35
    %v410 = vunpack.c.h.b16 %v35
    %v411 = vunpack.c.l.b16 %v36
    %v412 = vunpack.c.h.b16 %v36
    %v413 = vunpack.c.l.b16 %v37
    %v414 = vunpack.c.h.b16 %v37
    %v415 = vunpack.c.l.b16 %v38
    %v416 = vunpack.c.h.b16 %v38
    %v417 = vunpack.c.l.b16 %v39
    %v418 = vunpack.c.h.b16 %v39
    %v419 = vunpack.c.l.b16 %v40
    %v420 = vunpack.c.h.b16 %v40
    %v421 = vunpack.c.l.b16 %v41
    %v422 = vunpack.c.h.b16 %v41
    %v423 = vunpack.c.l.b16 %v42
    %v424 = vunpack.c.h.b16 %v42
    %v425 = vunpack.c.l.b16 %v43
    %v426 = vunpack.c.h.b16 %v43
    %v427 = vunpack.c.l.b16 %v44
    %v428 = vunpack.c.h.b16 %v44
    %v429 = vunpack.c.l.b16 %v45
    %v430 = vunpack.c.h.b16 %v45
    %v431 = vunpack.c.l.b16 %v46
    %v432 = vunpack.c.h.b16 %v46
    %v433 = vunpack.c.l.b16 %v47
    %v434 = vunpack.c.h.b16 %v47
    %v435 = vunpack.c.l.b16 %v48
    %v436 = vunpack.c.h.b16 %v48
    %v437 = vunpack.c.l.b16 %v49
    %v438 = vunpack.c.h.b16 %v49
    %v439 = vunpack.c.l.b16 %v50
    %v440 = vunpack.c.h.b16 %v50
    %v441 = vunpack.c.l.b16 %v51
    %v442 = vunpack.c.h.b16 %v51
    %v443 = vunpack.c.l.b16 %v52
    %v444 = vunpack.c.h.b16 %v52
    %v445 = vunpack.c.l.b16 %v53
    %v446 = vunpack.c.h.b16 %v53
    %v447 = vunpack.c.l.b16 %v54
    %v448 = vunpack.c.h.b16 %v54
    %v449 = vunpack.c.l.b16 %v55
    %v450 = vunpack.c.h.b16 %v55
    %v451 = vunpack.c.l.b16 %v56
    %v452 = vunpack.c.h.b16 %v56
    %v453 = vunpack.c.l.b16 %v57
    %v454 = vunpack.c.h.b16 %v57
    %v455 = vunpack.c.l.b16 %v58
    %v456 = vunpack.c.h.b16 %v58
    %v457 = vunpack.c.l.b16 %v59
    %v458 = vunpack.c.h.b16 %v59
    %v459 = vunpack.c.l.b16 %v60
    %v460 = vunpack.c.h.b16 %v60
    %v461 = vunpack.c.l.b16 %v61
    %v462 = vunpack.c.h.b16 %v61
    %v463 = vunpack.c.l.b16 %v62
    %v464 = vunpack.c.h.b16 %v62
    %v465 = vunpack.c.l.b16 %v63
    %v466 = vunpack.c.h.b16 %v63
    %v467 = vunpack.c.l.b16 %v64
    %v468 = vunpack.c.h.b16 %v64
    %v469 = vunpack.c.l.b16 %v65
    %v470 = vunpack.c.h.b16 %v65
    %v471 = vunpack.c.l.b16 %v66
    %v472 = vunpack.c.h.b16 %v66
    %v473 = vunpack.c.l.b16 %v67
    %v474 = vunpack.c.h.b16 %v67
    %v475 = vunpack.c.l.b16 %v68
    %v476 = vunpack.c.h.b16 %v68
    %v477 = vunpack.c.l.b16 %v69
    %v478 = vunpack.c.h.b16 %v69
    %v479 = vunpack.c.l.b16 %v70
    %v480 = vunpack.c.h.b16 %v70
    %v481 = vunpack.c.l.b16 %v71
    %v482 = vunpack.c.h.b16 %v71
    %v483 = vunpack.c.l.b16 %v72
    %v484 = vunpack.c.h.b16 %v72
    %v485 = vunpack.c.l.b16 %v73
    %v486 = vunpack.c.h.b16 %v73
    %v487 = vunpack.c.l.b16 %v74
    %v488 = vunpack.c.h.b16 %v74
    %v489 = vunpack.c.l.b16 %v75
    %v490 = vunpack.c.h.b16 %v75
    %v491 = vunpack.c.l.b16 %v76
    %v492 = vunpack.c.h.b16 %v76
    %v493 = vunpack.c.l.b16 %v77
    %v494 = vunpack.c.h.b16 %v77
    %v495 = vunpack.c.l.b16 %v78
    %v496 = vunpack.c.h.b16 %v78
    %v497 = vunpack.c.l.b16 %v79
    %v498 = vunpack.c.h.b16 %v79
    %v499 = vunpack.c.l.b16 %v80
    %v500 = vunpack.c.h.b16 %v80
    %v501 = vunpack.c.l.b16 %v81
    %v502 = vunpack.c.h.b16 %v81
    %v503 = vunpack.c.l.b16 %v82
    %v504 = vunpack.c.h.b16 %v82
    %v505 = vunpack.c.l.b16 %v83
    %v506 = vunpack.c.h.b16 %v83
    %v507 = vunpack.c.l.b16 %v84
    %v508 = vunpack.c.h.b16 %v84
    %v509 = vunpack.c.l.b16 %v85
    %v510 = vunpack.c.h.b16 %v85
    %v511 = vunpack.c.l.b16 %v86
    %v512 = vunpack.c.h.b16 %v86
    %v513 = vunpack.c.l.b16 %v87
    %v514 = vunpack.c.h.b16 %v87
    %v515 = vunpack.c.l.b16 %v88
    %v516 = vunpack.c.h.b16 %v88
    %v517 = vunpack.c.l.b16 %v89
    %v518 = vunpack.c.h.b16 %v89
    %v519 = vunpack.c.l.b16 %v90
    %v520 = vunpack.c.h.b16 %v90
    %v521 = vunpack.c.l.b16 %v91
    %v522 = vunpack.c.h.b16 %v91
    %v523 = vunpack.c.l.b16 %v92
    %v524 = vunpack.c.h.b16 %v92
    %v525 = vunpack.c.l.b16 %v93
    %v526 = vunpack.c.h.b16 %v93
    %v527 = vunpack.c.l.b16 %v94
    %v528 = vunpack.c.h.b16 %v94
    %v529 = vunpack.c.l.b16 %v95
    %v530 = vunpack.c.h.b16 %v95
    %v531 = vunpack.c.l.b16 %v96
    %v532 = vunpack.c.h.b16 %v96
    %v533 = vunpack.c.l.b16 %v97
    %v534 = vunpack.c.h.b16 %v97
    %v535 = vunpack.c.l.b16 %v98
    %v536 = vunpack.c.h.b16 %v98
    %v537 = vunpack.c.l.b16 %v99
    %v538 = vunpack.c.h.b16 %v99
    %v539 = vunpack.c.l.b16 %v100
    %v540 = vunpack.c.h.b16 %v100
    %v541 = vunpack.c.l.b16 %v101
    %v542 = vunpack.c.h.b16 %v101
    %v543 = vunpack.c.l.b16 %v102
    %v544 = vunpack.c.h.b16 %v102
    %v545 = vunpack.c.l.b16 %v103
    %v546 = vunpack.c.h.b16 %v103
    %v547 = vunpack.c.l.b16 %v104
    %v548 = vunpack.c.h.b16 %v104
    %v549 = vunpack.c.l.b16 %v105
    %v550 = vunpack.c.h.b16 %v105
    %v551 = vunpack.c.l.b16 %v106
    %v552 = vunpack.c.h.b16 %v106
    %v553 = vunpack.c.l.b16 %v107
    %v554 = vunpack.c.h.b16 %v107
    %v555 = vunpack.c.l.b16 %v108
    %v556 = vunpack.c.h.b16 %v108
    %v557 = vunpack.c.l.b16 %v109
    %v558 = vunpack.c.h.b16 %v109
    %v559 = vunpack.c.l.b16 %v110
    %v560 = vunpack.c.h.b16 %v110
    %v561 = vunpack.c.l.b16 %v111
    %v562 = vunpack.c.h.b16 %v111
    %v563 = vunpack.c.l.b16 %v112
    %v564 = vunpack.c.h.b16 %v112
    %v565 = vunpack.c.l.b16 %v113
    %v566 = vunpack.c.h.b16 %v113
    %v567 = vunpack.c.l.b16 %v114
    %v568 = vunpack.c.h.b16 %v114
    %v569 = vunpack.c.l.b16 %v115
    %v570 = vunpack.c.h.b16 %v115
    %v571 = vunpack.c.l.b16 %v116
    %v572 = vunpack.c.h.b16 %v116
    %v573 = vunpack.c.l.b16 %v117
    %v574 = vunpack.c.h.b16 %v117
    %v575 = vunpack.c.l.b16 %v118
    %v576 = vunpack.c.h.b16 %v118
    %v577 = vunpack.c.l.b16 %v119
    %v578 = vunpack.c.h.b16 %v119
    %v579 = vunpack.c.l.b16 %v120
    %v580 = vunpack.c.h.b16 %v120
    %v581 = vunpack.c.l.b16 %v121
    %v582 = vunpack.c.h.b16 %v121
    %v583 = vunpack.c.l.b16 %v122
    %v584 = vunpack.c.h.b16 %v122
    %v585 = vunpack.c.l.b16 %v123
    %v586 = vunpack.c.h.b16 %v123
    %v587 = vunpack.c.l.b16 %v124
    %v588 = vunpack.c.h.b16 %v124
    %v589 = vunpack.c.l.b16 %v125
    %v590 = vunpack.c.h.b16 %v125
    %v591 = vunpack.c.l.b16 %v126
    %v592 = vunpack.c.h.b16 %v126
    %v593 = vunpack.c.l.b16 %v127
    %v594 = vunpack.c.h.b16 %v127
    %v595 = vunpack.c.l.b16 %v128
    %v596 = vunpack.c.h.b16 %v128
    %v597 = vunpack.c.l.b16 %v129
    %v598 = vunpack.c.h.b16 %v129
    %v599 = vunpack.c.l.b16 %v130
    %v600 = vunpack.c.h.b16 %v130
    %v601 = vunpack.c.l.b16 %v131
    %v602 = vunpack.c.h.b16 %v131
    %v603 = vunpack.c.l.b16 %v132
    %v604 = vunpack.c.h.b16 %v132
    %v605 = vunpack.c.l.b16 %v133
    %v606 = vunpack.c.h.b16 %v133
    %v607 = vunpack.c.l.b16 %v134
    %v608 = vunpack.c.h.b16 %v134
    %v609 = vunpack.c.l.b16 %v135
    %v610 = vunpack.c.h.b16 %v135
    %v611 = vunpack.c.l.b16 %v136
    %v612 = vunpack.c.h.b16 %v136
    %v613 = vunpack.c.l.b16 %v137
    %v614 = vunpack.c.h.b16 %v137
    %v615 = vunpack.c.l.b16 %v138
    %v616 = vunpack.c.h.b16 %v138
    %v617 = vunpack.c.l.b16 %v139
    %v618 = vunpack.c.h.b16 %v139
    %v619 = vunpack.c.l.b16 %v140
    %v620 = vunpack.c.h.b16 %v140
    %v621 = vunpack.c.l.b16 %v141
    %v622 = vunpack.c.h.b16 %v141
    %v623 = vunpack.c.l.b16 %v142
    %v624 = vunpack.c.h.b16 %v142
    %v625 = vunpack.c.l.b16 %v143
    %v626 = vunpack.c.h.b16 %v143
    %v627 = vunpack.c.l.b16 %v144
    %v628 = vunpack.c.h.b16 %v144
    %v629 = vunpack.c.l.b16 %v145
    %v630 = vunpack.c.h.b16 %v145
    %v631 = vunpack.c.l.b16 %v146
    %v632 = vunpack.c.h.b16 %v146
    %v633 = vunpack.c.l.b16 %v147
    %v634 = vunpack.c.h.b16 %v147
    %v635 = vunpack.c.l.b16 %v148
    %v636 = vunpack.c.h.b16 %v148
    %v637 = vunpack.c.l.b16 %v149
    %v638 = vunpack.c.h.b16 %v149
    %v639 = vunpack.c.l.b16 %v150
    %v640 = vunpack.c.h.b16 %v150
    %v641 = vunpack.c.l.b16 %v151
    %v642 = vunpack.c.h.b16 %v151
    %v643 = vunpack.c.l.b16 %v152
    %v644 = vunpack.c.h.b16 %v152
    %v645 = vunpack.c.l.b16 %v153
    %v646 = vunpack.c.h.b16 %v153
    %v647 = vunpack.c.l.b16 %v154
    %v648 = vunpack.c.h.b16 %v154
    %v649 = vunpack.c.l.b16 %v155
    %v650 = vunpack.c.h.b16 %v155
    %v651 = vunpack.c.l.b16 %v156
    %v652 = vunpack.c.h.b16 %v156
    %v653 = vunpack.c.l.b16 %v157
    %v654 = vunpack.c.h.b16 %v157
    %v655 = vunpack.c.l.b16 %v158
    %v656 = vunpack.c.h.b16 %v158
    %v657 = vunpack.c.l.b16 %v159
    %v658 = vunpack.c.h.b16 %v159
    %v659 = vunpack.c.l.b16 %v160
    %v660 = vunpack.c.h.b16 %v160
    %v661 = vunpack.c.l.b16 %v161
    %v662 = vunpack.c.h.b16 %v161
    %v663 = vunpack.c.l.b16 %v162
    %v664 = vunpack.c.h.b16 %v162
    %v665 = vpack.c.b16 %v425, %v409
    %v666 = vpack.c.b16 %v426, %v410
    %v667 = vpack.c.b16 %v427, %v411
    %v668 = vpack.c.b16 %v428, %v412
    %v669 = vpack.c.b16 %v429, %v413
    %v670 = vpack.c.b16 %v430, %v414
    %v671 = vpack.c.b16 %v431, %v415
    %v672 = vpack.c.b16 %v432, %v416
    %v673 = vpack.c.b16 %v433, %v417
    %v674 = vpack.c.b16 %v434, %v418
    %v675 = vpack.c.b16 %v435, %v419
    %v676 = vpack.c.b16 %v436, %v420
    %v677 = vpack.c.b16 %v437, %v421
    %v678 = vpack.c.b16 %v438, %v422
    %v679 = vpack.c.b16 %v439, %v423
    %v680 = vpack.c.b16 %v440, %v424
    %v681 = vpack.c.b16 %v457, %v441
    %v682 = vpack.c.b16 %v458, %v442
    %v683 = vpack.c.b16 %v459, %v443
    %v684 = vpack.c.b16 %v460, %v444
    %v685 = vpack.c.b16 %v461, %v445
    %v686 = vpack.c.b16 %v462, %v446
    %v687 = vpack.c.b16 %v463, %v447
    %v688 = vpack.c.b16 %v464, %v448
    %v689 = vpack.c.b16 %v465, %v449
    %v690 = vpack.c.b16 %v466, %v450
    %v691 = vpack.c.b16 %v467, %v451
    %v692 = vpack.c.b16 %v468, %v452
    %v693 = vpack.c.b16 %v469, %v453
    %v694 = vpack.c.b16 %v470, %v454
    %v695 = vpack.c.b16 %v471, %v455
    %v696 = vpack.c.b16 %v472, %v456
    %v697 = vpack.c.b16 %v489, %v473
    %v698 = vpack.c.b16 %v490, %v474
    %v699 = vpack.c.b16 %v491, %v475
    %v700 = vpack.c.b16 %v492, %v476
    %v701 = vpack.c.b16 %v493, %v477
    %v702 = vpack.c.b16 %v494, %v478
    %v703 = vpack.c.b16 %v495, %v479
    %v704 = vpack.c.b16 %v496, %v480
    %v705 = vpack.c.b16 %v497, %v481
    %v706 = vpack.c.b16 %v498, %v482
    %v707 = vpack.c.b16 %v499, %v483
    %v708 = vpack.c.b16 %v500, %v484
    %v709 = vpack.c.b16 %v501, %v485
    %v710 = vpack.c.b16 %v502, %v486
    %v711 = vpack.c.b16 %v503, %v487
    %v712 = vpack.c.b16 %v504, %v488
    %v713 = vpack.c.b16 %v521, %v505
    %v714 = vpack.c.b16 %v522, %v506
    %v715 = vpack.c.b16 %v523, %v507
    %v716 = vpack.c.b16 %v524, %v508
    %v717 = vpack.c.b16 %v525, %v509
    %v718 = vpack.c.b16 %v526, %v510
    %v719 = vpack.c.b16 %v527, %v511
    %v720 = vpack.c.b16 %v528, %v512
    %v721 = vpack.c.b16 %v529, %v513
    %v722 = vpack.c.b16 %v530, %v514
    %v723 = vpack.c.b16 %v531, %v515
    %v724 = vpack.c.b16 %v532, %v516
    %v725 = vpack.c.b16 %v533, %v517
    %v726 = vpack.c.b16 %v534, %v518
    %v727 = vpack.c.b16 %v535, %v519
    %v728 = vpack.c.b16 %v536, %v520
    %v729 = vpack.c.b16 %v553, %v537
    %v730 = vpack.c.b16 %v554, %v538
    %v731 = vpack.c.b16 %v555, %v539
    %v732 = vpack.c.b16 %v556, %v540
    %v733 = vpack.c.b16 %v557, %v541
    %v734 = vpack.c.b16 %v558, %v542
    %v735 = vpack.c.b16 %v559, %v543
    %v736 = vpack.c.b16 %v560, %v544
    %v737 = vpack.c.b16 %v561, %v545
    %v738 = vpack.c.b16 %v562, %v546
    %v739 = vpack.c.b16 %v563, %v547
    %v740 = vpack.c.b16 %v564, %v548
    %v741 = vpack.c.b16 %v565, %v549
    %v742 = vpack.c.b16 %v566, %v550
    %v743 = vpack.c.b16 %v567, %v551
    %v744 = vpack.c.b16 %v568, %v552
    %v745 = vpack.c.b16 %v585, %v569
    %v746 = vpack.c.b16 %v586, %v570
    %v747 = vpack.c.b16 %v587, %v571
    %v748 = vpack.c.b16 %v588, %v572
    %v749 = vpack.c.b16 %v589, %v573
    %v750 = vpack.c.b16 %v590, %v574
    %v751 = vpack.c.b16 %v591, %v575
    %v752 = vpack.c.b16 %v592, %v576
    %v753 = vpack.c.b16 %v593, %v577
    %v754 = vpack.c.b16 %v594, %v578
    %v755 = vpack.c.b16 %v595, %v579
    %v756 = vpack.c.b16 %v596, %v580
    %v757 = vpack.c.b16 %v597, %v581
    %v758 = vpack.c.b16 %v598, %v582
    %v759 = vpack.c.b16 %v599, %v583
    %v760 = vpack.c.b16 %v600, %v584
    %v761 = vpack.c.b16 %v617, %v601
    %v762 = vpack.c.b16 %v618, %v602
    %v763 = vpack.c.b16 %v619, %v603
    %v764 = vpack.c.b16 %v620, %v604
    %v765 = vpack.c.b16 %v621, %v605
    %v766 = vpack.c.b16 %v622, %v606
    %v767 = vpack.c.b16 %v623, %v607
    %v768 = vpack.c.b16 %v624, %v608
    %v769 = vpack.c.b16 %v625, %v609
    %v770 = vpack.c.b16 %v626, %v610
    %v771 = vpack.c.b16 %v627, %v611
    %v772 = vpack.c.b16 %v628, %v612
    %v773 = vpack.c.b16 %v629, %v613
    %v774 = vpack.c.b16 %v630, %v614
    %v775 = vpack.c.b16 %v631, %v615
    %v776 = vpack.c.b16 %v632, %v616
    %v777 = vpack.c.b16 %v649, %v633
    %v778 = vpack.c.b16 %v650, %v634
    %v779 = vpack.c.b16 %v651, %v635
    %v780 = vpack.c.b16 %v652, %v636
    %v781 = vpack.c.b16 %v653, %v637
    %v782 = vpack.c.b16 %v654, %v638
    %v783 = vpack.c.b16 %v655, %v639
    %v784 = vpack.c.b16 %v656, %v640
    %v785 = vpack.c.b16 %v657, %v641
    %v786 = vpack.c.b16 %v658, %v642
    %v787 = vpack.c.b16 %v659, %v643
    %v788 = vpack.c.b16 %v660, %v644
    %v789 = vpack.c.b16 %v661, %v645
    %v790 = vpack.c.b16 %v662, %v646
    %v791 = vpack.c.b16 %v663, %v647
    %v792 = vpack.c.b16 %v664, %v648
    %921 = vmatprep.subr.bf16.mxu0 %v778
    %922 = vmatpush1.bf16.xpose.msra.mxu0 %v777
    %923 = vmatprep.subr.bf16.mxu0 %v762
    %924 = vmatpush1.bf16.xpose.msra.mxu0 %v761
    %925 = vmatprep.subr.bf16.mxu0 %v746
    %926 = vmatpush1.bf16.xpose.msra.mxu0 %v745
    %927 = vmatprep.subr.bf16.mxu0 %v730
    %928 = vmatpush1.bf16.xpose.msra.mxu0 %v729
    %929 = vmatprep.subr.bf16.mxu0 %v714
    %930 = vmatpush1.bf16.xpose.msra.mxu0 %v713
    %931 = vmatprep.subr.bf16.mxu0 %v698
    %932 = vmatpush1.bf16.xpose.msra.mxu0 %v697
    %933 = vmatprep.subr.bf16.mxu0 %v682
    %934 = vmatpush1.bf16.xpose.msra.mxu0 %v681
    %935 = vmatprep.subr.bf16.mxu0 %v666
    %936 = vmatpush1.bf16.xpose.msra.mxu0 %v665
    %937 = vmatprep.subr.bf16.mxu0 0
    %938 = vmatpush2.bf16.xpose.msra.mxu0 0
    %939 = vmatprep.subr.bf16.mxu0 0
    %940 = vmatpush2.bf16.xpose.msra.mxu0 0
    %941 = vmatprep.subr.bf16.mxu0 0
    %942 = vmatpush2.bf16.xpose.msra.mxu0 0
    %943 = vmatprep.subr.bf16.mxu0 0
    %944 = vmatpush2.bf16.xpose.msra.mxu0 0
    %945 = vmatprep.subr.bf16.mxu0 0
    %946 = vmatpush2.bf16.xpose.msra.mxu0 0
    %947 = vmatprep.subr.bf16.mxu0 0
    %948 = vmatpush2.bf16.xpose.msra.mxu0 0
    %949 = vmatprep.subr.bf16.mxu0 0
    %950 = vmatpush2.bf16.xpose.msra.mxu0 0
    %951 = vmatprep.subr.bf16.mxu0 0
    %952 = vmatpush2.bf16.xpose.msra.mxu0 0
    %953 = vmatprep.mubr.bf16.mxu0 %v204
    %954 = vmatmul.mubr.bf16.gmra.mxu0 %v190
    %v955 = vpop.f32.mrf.mxu0
    %v956 = vadd.f32 0.0, %v955
    %v957 = vpop.f32.mrf.mxu0
    %v958 = vpop.f32.mrf.mxu0
    %v959 = vpop.f32.mrf.mxu0
    %960 = vdwg.mxu0
    %961 = vmatprep.subr.bf16.mxu0 %v780
    %962 = vmatpush1.bf16.xpose.msra.mxu0 %v779
    %963 = vmatprep.subr.bf16.mxu0 %v764
    %964 = vmatpush1.bf16.xpose.msra.mxu0 %v763
    %965 = vmatprep.subr.bf16.mxu0 %v748
    %966 = vmatpush1.bf16.xpose.msra.mxu0 %v747
    %967 = vmatprep.subr.bf16.mxu0 %v732
    %968 = vmatpush1.bf16.xpose.msra.mxu0 %v731
    %969 = vmatprep.subr.bf16.mxu0 %v716
    %970 = vmatpush1.bf16.xpose.msra.mxu0 %v715
    %971 = vmatprep.subr.bf16.mxu0 %v700
    %972 = vmatpush1.bf16.xpose.msra.mxu0 %v699
    %973 = vmatprep.subr.bf16.mxu0 %v684
    %974 = vmatpush1.bf16.xpose.msra.mxu0 %v683
    %975 = vmatprep.subr.bf16.mxu0 %v668
    %976 = vmatpush1.bf16.xpose.msra.mxu0 %v667
    %977 = vmatprep.subr.bf16.mxu0 0
    %978 = vmatpush2.bf16.xpose.msra.mxu0 0
    %979 = vmatprep.subr.bf16.mxu0 0
    %980 = vmatpush2.bf16.xpose.msra.mxu0 0
    %981 = vmatprep.subr.bf16.mxu0 0
    %982 = vmatpush2.bf16.xpose.msra.mxu0 0
    %983 = vmatprep.subr.bf16.mxu0 0
    %984 = vmatpush2.bf16.xpose.msra.mxu0 0
    %985 = vmatprep.subr.bf16.mxu0 0
    %986 = vmatpush2.bf16.xpose.msra.mxu0 0
    %987 = vmatprep.subr.bf16.mxu0 0
    %988 = vmatpush2.bf16.xpose.msra.mxu0 0
    %989 = vmatprep.subr.bf16.mxu0 0
    %990 = vmatpush2.bf16.xpose.msra.mxu0 0
    %991 = vmatprep.subr.bf16.mxu0 0
    %992 = vmatpush2.bf16.xpose.msra.mxu0 0
    %993 = vmatprep.mubr.bf16.mxu0 %v214
    %994 = vmatmul.mubr.bf16.gmra.mxu0 %v212
    %v995 = vpop.f32.mrf.mxu0
    %v996 = vadd.f32 %v956, %v995
    %v997 = vpop.f32.mrf.mxu0
    %v998 = vpop.f32.mrf.mxu0
    %v999 = vpop.f32.mrf.mxu0
    %1000 = vdwg.mxu0
    %1001 = vmatprep.subr.bf16.mxu0 %v782
    %1002 = vmatpush1.bf16.xpose.msra.mxu0 %v781
    %1003 = vmatprep.subr.bf16.mxu0 %v766
    %1004 = vmatpush1.bf16.xpose.msra.mxu0 %v765
    %1005 = vmatprep.subr.bf16.mxu0 %v750
    %1006 = vmatpush1.bf16.xpose.msra.mxu0 %v749
    %1007 = vmatprep.subr.bf16.mxu0 %v734
    %1008 = vmatpush1.bf16.xpose.msra.mxu0 %v733
    %1009 = vmatprep.subr.bf16.mxu0 %v718
    %1010 = vmatpush1.bf16.xpose.msra.mxu0 %v717
    %1011 = vmatprep.subr.bf16.mxu0 %v702
    %1012 = vmatpush1.bf16.xpose.msra.mxu0 %v701
    %1013 = vmatprep.subr.bf16.mxu0 %v686
    %1014 = vmatpush1.bf16.xpose.msra.mxu0 %v685
    %1015 = vmatprep.subr.bf16.mxu0 %v670
    %1016 = vmatpush1.bf16.xpose.msra.mxu0 %v669
    %1017 = vmatprep.subr.bf16.mxu0 0
    %1018 = vmatpush2.bf16.xpose.msra.mxu0 0
    %1019 = vmatprep.subr.bf16.mxu0 0
    %1020 = vmatpush2.bf16.xpose.msra.mxu0 0
    %1021 = vmatprep.subr.bf16.mxu0 0
    %1022 = vmatpush2.bf16.xpose.msra.mxu0 0
    %1023 = vmatprep.subr.bf16.mxu0 0
    %1024 = vmatpush2.bf16.xpose.msra.mxu0 0
    %1025 = vmatprep.subr.bf16.mxu0 0
    %1026 = vmatpush2.bf16.xpose.msra.mxu0 0
    %1027 = vmatprep.subr.bf16.mxu0 0
    %1028 = vmatpush2.bf16.xpose.msra.mxu0 0
    %1029 = vmatprep.subr.bf16.mxu0 0
    %1030 = vmatpush2.bf16.xpose.msra.mxu0 0
    %1031 = vmatprep.subr.bf16.mxu0 0
    %1032 = vmatpush2.bf16.xpose.msra.mxu0 0
    %1033 = vmatprep.mubr.bf16.mxu0 %v211
    %1034 = vmatmul.mubr.bf16.gmra.mxu0 %v197
    %v1035 = vpop.f32.mrf.mxu0
    %v1036 = vadd.f32 %v996, %v1035
    %v1037 = vpop.f32.mrf.mxu0
    %v1038 = vpop.f32.mrf.mxu0
    %v1039 = vpop.f32.mrf.mxu0
    %1040 = vdwg.mxu0
    %1041 = vmatprep.subr.bf16.mxu0 %v784
    %1042 = vmatpush1.bf16.xpose.msra.mxu0 %v783
    %1043 = vmatprep.subr.bf16.mxu0 %v768
    %1044 = vmatpush1.bf16.xpose.msra.mxu0 %v767
    %1045 = vmatprep.subr.bf16.mxu0 %v752
    %1046 = vmatpush1.bf16.xpose.msra.mxu0 %v751
    %1047 = vmatprep.subr.bf16.mxu0 %v736
    %1048 = vmatpush1.bf16.xpose.msra.mxu0 %v735
    %1049 = vmatprep.subr.bf16.mxu0 %v720
    %1050 = vmatpush1.bf16.xpose.msra.mxu0 %v719
    %1051 = vmatprep.subr.bf16.mxu0 %v704
    %1052 = vmatpush1.bf16.xpose.msra.mxu0 %v703
    %1053 = vmatprep.subr.bf16.mxu0 %v688
    %1054 = vmatpush1.bf16.xpose.msra.mxu0 %v687
    %1055 = vmatprep.subr.bf16.mxu0 %v672
    %1056 = vmatpush1.bf16.xpose.msra.mxu0 %v671
    %1057 = vmatprep.subr.bf16.mxu0 0
    %1058 = vmatpush2.bf16.xpose.msra.mxu0 0
    %1059 = vmatprep.subr.bf16.mxu0 0
    %1060 = vmatpush2.bf16.xpose.msra.mxu0 0
    %1061 = vmatprep.subr.bf16.mxu0 0
    %1062 = vmatpush2.bf16.xpose.msra.mxu0 0
    %1063 = vmatprep.subr.bf16.mxu0 0
    %1064 = vmatpush2.bf16.xpose.msra.mxu0 0
    %1065 = vmatprep.subr.bf16.mxu0 0
    %1066 = vmatpush2.bf16.xpose.msra.mxu0 0
    %1067 = vmatprep.subr.bf16.mxu0 0
    %1068 = vmatpush2.bf16.xpose.msra.mxu0 0
    %1069 = vmatprep.subr.bf16.mxu0 0
    %1070 = vmatpush2.bf16.xpose.msra.mxu0 0
    %1071 = vmatprep.subr.bf16.mxu0 0
    %1072 = vmatpush2.bf16.xpose.msra.mxu0 0
    %1073 = vmatprep.mubr.bf16.mxu0 %v215
    %1074 = vmatmul.mubr.bf16.gmra.mxu0 %v213
    %v1075 = vpop.f32.mrf.mxu0
    %v1076 = vadd.f32 %v1036, %v1075
    %v1077 = vpop.f32.mrf.mxu0
    %v1078 = vpop.f32.mrf.mxu0
    %v1079 = vpop.f32.mrf.mxu0
    %1080 = vdwg.mxu0
    %1081 = vmatprep.subr.bf16.mxu0 %v786
    %1082 = vmatpush1.bf16.xpose.msra.mxu0 %v785
    %1083 = vmatprep.subr.bf16.mxu0 %v770
    %1084 = vmatpush1.bf16.xpose.msra.mxu0 %v769
    %1085 = vmatprep.subr.bf16.mxu0 %v754
    %1086 = vmatpush1.bf16.xpose.msra.mxu0 %v753
    %1087 = vmatprep.subr.bf16.mxu0 %v738
    %1088 = vmatpush1.bf16.xpose.msra.mxu0 %v737
    %1089 = vmatprep.subr.bf16.mxu0 %v722
    %1090 = vmatpush1.bf16.xpose.msra.mxu0 %v721
    %1091 = vmatprep.subr.bf16.mxu0 %v706
    %1092 = vmatpush1.bf16.xpose.msra.mxu0 %v705
    %1093 = vmatprep.subr.bf16.mxu0 %v690
    %1094 = vmatpush1.bf16.xpose.msra.mxu0 %v689
    %1095 = vmatprep.subr.bf16.mxu0 %v674
    %1096 = vmatpush1.bf16.xpose.msra.mxu0 %v673
    %1097 = vmatprep.subr.bf16.mxu0 0
    %1098 = vmatpush2.bf16.xpose.msra.mxu0 0
    %1099 = vmatprep.subr.bf16.mxu0 0
    %1100 = vmatpush2.bf16.xpose.msra.mxu0 0
    %1101 = vmatprep.subr.bf16.mxu0 0
    %1102 = vmatpush2.bf16.xpose.msra.mxu0 0
    %1103 = vmatprep.subr.bf16.mxu0 0
    %1104 = vmatpush2.bf16.xpose.msra.mxu0 0
    %1105 = vmatprep.subr.bf16.mxu0 0
    %1106 = vmatpush2.bf16.xpose.msra.mxu0 0
    %1107 = vmatprep.subr.bf16.mxu0 0
    %1108 = vmatpush2.bf16.xpose.msra.mxu0 0
    %1109 = vmatprep.subr.bf16.mxu0 0
    %1110 = vmatpush2.bf16.xpose.msra.mxu0 0
    %1111 = vmatprep.subr.bf16.mxu0 0
    %1112 = vmatpush2.bf16.xpose.msra.mxu0 0
    %1113 = vmatprep.mubr.bf16.mxu0 %v253
    %1114 = vmatmul.mubr.bf16.gmra.mxu0 %v239
    %v1115 = vpop.f32.mrf.mxu0
    %v1116 = vadd.f32 %v1076, %v1115
    %v1117 = vpop.f32.mrf.mxu0
    %v1118 = vpop.f32.mrf.mxu0
    %v1119 = vpop.f32.mrf.mxu0
    %1120 = vdwg.mxu0
    %1121 = vmatprep.subr.bf16.mxu0 %v788
    %1122 = vmatpush1.bf16.xpose.msra.mxu0 %v787
    %1123 = vmatprep.subr.bf16.mxu0 %v772
    %1124 = vmatpush1.bf16.xpose.msra.mxu0 %v771
    %1125 = vmatprep.subr.bf16.mxu0 %v756
    %1126 = vmatpush1.bf16.xpose.msra.mxu0 %v755
    %1127 = vmatprep.subr.bf16.mxu0 %v740
    %1128 = vmatpush1.bf16.xpose.msra.mxu0 %v739
    %1129 = vmatprep.subr.bf16.mxu0 %v724
    %1130 = vmatpush1.bf16.xpose.msra.mxu0 %v723
    %1131 = vmatprep.subr.bf16.mxu0 %v708
    %1132 = vmatpush1.bf16.xpose.msra.mxu0 %v707
    %1133 = vmatprep.subr.bf16.mxu0 %v692
    %1134 = vmatpush1.bf16.xpose.msra.mxu0 %v691
    %1135 = vmatprep.subr.bf16.mxu0 %v676
    %1136 = vmatpush1.bf16.xpose.msra.mxu0 %v675
    %1137 = vmatprep.subr.bf16.mxu0 0
    %1138 = vmatpush2.bf16.xpose.msra.mxu0 0
    %1139 = vmatprep.subr.bf16.mxu0 0
    %1140 = vmatpush2.bf16.xpose.msra.mxu0 0
    %1141 = vmatprep.subr.bf16.mxu0 0
    %1142 = vmatpush2.bf16.xpose.msra.mxu0 0
    %1143 = vmatprep.subr.bf16.mxu0 0
    %1144 = vmatpush2.bf16.xpose.msra.mxu0 0
    %1145 = vmatprep.subr.bf16.mxu0 0
    %1146 = vmatpush2.bf16.xpose.msra.mxu0 0
    %1147 = vmatprep.subr.bf16.mxu0 0
    %1148 = vmatpush2.bf16.xpose.msra.mxu0 0
    %1149 = vmatprep.subr.bf16.mxu0 0
    %1150 = vmatpush2.bf16.xpose.msra.mxu0 0
    %1151 = vmatprep.subr.bf16.mxu0 0
    %1152 = vmatpush2.bf16.xpose.msra.mxu0 0
    %1153 = vmatprep.mubr.bf16.mxu0 %v263
    %1154 = vmatmul.mubr.bf16.gmra.mxu0 %v261
    %v1155 = vpop.f32.mrf.mxu0
    %v1156 = vadd.f32 %v1116, %v1155
    %v1157 = vpop.f32.mrf.mxu0
    %v1158 = vpop.f32.mrf.mxu0
    %v1159 = vpop.f32.mrf.mxu0
    %1160 = vdwg.mxu0
    %1161 = vmatprep.subr.bf16.mxu0 %v790
    %1162 = vmatpush1.bf16.xpose.msra.mxu0 %v789
    %1163 = vmatprep.subr.bf16.mxu0 %v774
    %1164 = vmatpush1.bf16.xpose.msra.mxu0 %v773
    %1165 = vmatprep.subr.bf16.mxu0 %v758
    %1166 = vmatpush1.bf16.xpose.msra.mxu0 %v757
    %1167 = vmatprep.subr.bf16.mxu0 %v742
    %1168 = vmatpush1.bf16.xpose.msra.mxu0 %v741
    %1169 = vmatprep.subr.bf16.mxu0 %v726
    %1170 = vmatpush1.bf16.xpose.msra.mxu0 %v725
    %1171 = vmatprep.subr.bf16.mxu0 %v710
    %1172 = vmatpush1.bf16.xpose.msra.mxu0 %v709
    %1173 = vmatprep.subr.bf16.mxu0 %v694
    %1174 = vmatpush1.bf16.xpose.msra.mxu0 %v693
    %1175 = vmatprep.subr.bf16.mxu0 %v678
    %1176 = vmatpush1.bf16.xpose.msra.mxu0 %v677
    %1177 = vmatprep.subr.bf16.mxu0 0
    %1178 = vmatpush2.bf16.xpose.msra.mxu0 0
    %1179 = vmatprep.subr.bf16.mxu0 0
    %1180 = vmatpush2.bf16.xpose.msra.mxu0 0
    %1181 = vmatprep.subr.bf16.mxu0 0
    %1182 = vmatpush2.bf16.xpose.msra.mxu0 0
    %1183 = vmatprep.subr.bf16.mxu0 0
    %1184 = vmatpush2.bf16.xpose.msra.mxu0 0
    %1185 = vmatprep.subr.bf16.mxu0 0
    %1186 = vmatpush2.bf16.xpose.msra.mxu0 0
    %1187 = vmatprep.subr.bf16.mxu0 0
    %1188 = vmatpush2.bf16.xpose.msra.mxu0 0
    %1189 = vmatprep.subr.bf16.mxu0 0
    %1190 = vmatpush2.bf16.xpose.msra.mxu0 0
    %1191 = vmatprep.subr.bf16.mxu0 0
    %1192 = vmatpush2.bf16.xpose.msra.mxu0 0
    %1193 = vmatprep.mubr.bf16.mxu0 %v260
    %1194 = vmatmul.mubr.bf16.gmra.mxu0 %v246
    %v1195 = vpop.f32.mrf.mxu0
    %v1196 = vadd.f32 %v1156, %v1195
    %v1197 = vpop.f32.mrf.mxu0
    %v1198 = vpop.f32.mrf.mxu0
    %v1199 = vpop.f32.mrf.mxu0
    %1200 = vdwg.mxu0
    %1201 = vmatprep.subr.bf16.mxu0 %v792
    %1202 = vmatpush1.bf16.xpose.msra.mxu0 %v791
    %1203 = vmatprep.subr.bf16.mxu0 %v776
    %1204 = vmatpush1.bf16.xpose.msra.mxu0 %v775
    %1205 = vmatprep.subr.bf16.mxu0 %v760
    %1206 = vmatpush1.bf16.xpose.msra.mxu0 %v759
    %1207 = vmatprep.subr.bf16.mxu0 %v744
    %1208 = vmatpush1.bf16.xpose.msra.mxu0 %v743
    %1209 = vmatprep.subr.bf16.mxu0 %v728
    %1210 = vmatpush1.bf16.xpose.msra.mxu0 %v727
    %1211 = vmatprep.subr.bf16.mxu0 %v712
    %1212 = vmatpush1.bf16.xpose.msra.mxu0 %v711
    %1213 = vmatprep.subr.bf16.mxu0 %v696
    %1214 = vmatpush1.bf16.xpose.msra.mxu0 %v695
    %1215 = vmatprep.subr.bf16.mxu0 %v680
    %1216 = vmatpush1.bf16.xpose.msra.mxu0 %v679
    %1217 = vmatprep.subr.bf16.mxu0 0
    %1218 = vmatpush2.bf16.xpose.msra.mxu0 0
    %1219 = vmatprep.subr.bf16.mxu0 0
    %1220 = vmatpush2.bf16.xpose.msra.mxu0 0
    %1221 = vmatprep.subr.bf16.mxu0 0
    %1222 = vmatpush2.bf16.xpose.msra.mxu0 0
    %1223 = vmatprep.subr.bf16.mxu0 0
    %1224 = vmatpush2.bf16.xpose.msra.mxu0 0
    %1225 = vmatprep.subr.bf16.mxu0 0
    %1226 = vmatpush2.bf16.xpose.msra.mxu0 0
    %1227 = vmatprep.subr.bf16.mxu0 0
    %1228 = vmatpush2.bf16.xpose.msra.mxu0 0
    %1229 = vmatprep.subr.bf16.mxu0 0
    %1230 = vmatpush2.bf16.xpose.msra.mxu0 0
    %1231 = vmatprep.subr.bf16.mxu0 0
    %1232 = vmatpush2.bf16.xpose.msra.mxu0 0
    %1233 = vmatprep.mubr.bf16.mxu0 %v264
    %1234 = vmatmul.mubr.bf16.gmra.mxu0 %v262
    %v1235 = vpop.f32.mrf.mxu0
    %v1236 = vadd.f32 %v1196, %v1235
    %v1237 = vpop.f32.mrf.mxu0
    %v1238 = vpop.f32.mrf.mxu0
    %v1239 = vpop.f32.mrf.mxu0
    %1240 = vdwg.mxu0
    %v1241 = vmul.f32 %v1236, %v1236
    %vm1242 = vcmask 1040384
    %v1243 = vsel %vm1242, %v1241, 0.0
    %1244 = vadd.xlane.f32.xlu0 %v1243
    %v1245 = vpop.xlane.xlu0 %1244
    %v1246 = vrsqrt.pop %v1245
    %v1247 = vmul.f32 %v1245, %v1246
    %vm1248 = vcmp.eq.f32.partialorder %v1245, inf
    %v1249 = vsel %vm1248, %v1245, %v1247
    %vm1250 = vcmp.eq.f32.partialorder %v1245, 0.0
    %v1251 = vand.u32 %v1245, 2147483648
    %v1252 = vsel %vm1250, %v1251, %v1249
    %v1253 = vmax.f32 %v1252, 1e-12
    %v1254 = vrcp.pop %v1253
    %v1255 = vmul.f32 %v1236, %v1254
    %v1256 = vpack.c.bf16 %v1255, %v1255
    %1257 = vmatprep.subr.bf16.mxu0 %v778
    %1258 = vmatpush1.bf16.msra.mxu0 %v777
    %1259 = vmatprep.subr.bf16.mxu0 %v762
    %1260 = vmatpush1.bf16.msra.mxu0 %v761
    %1261 = vmatprep.subr.bf16.mxu0 %v746
    %1262 = vmatpush1.bf16.msra.mxu0 %v745
    %1263 = vmatprep.subr.bf16.mxu0 %v730
    %1264 = vmatpush1.bf16.msra.mxu0 %v729
    %1265 = vmatprep.subr.bf16.mxu0 %v714
    %1266 = vmatpush1.bf16.msra.mxu0 %v713
    %1267 = vmatprep.subr.bf16.mxu0 %v698
    %1268 = vmatpush1.bf16.msra.mxu0 %v697
    %1269 = vmatprep.subr.bf16.mxu0 %v682
    %1270 = vmatpush1.bf16.msra.mxu0 %v681
    %1271 = vmatprep.subr.bf16.mxu0 %v666
    %1272 = vmatpush1.bf16.msra.mxu0 %v665
    %1273 = vmatprep.subr.bf16.mxu0 0
    %1274 = vmatpush2.bf16.msra.mxu0 0
    %1275 = vmatprep.subr.bf16.mxu0 0
    %1276 = vmatpush2.bf16.msra.mxu0 0
    %1277 = vmatprep.subr.bf16.mxu0 0
    %1278 = vmatpush2.bf16.msra.mxu0 0
    %1279 = vmatprep.subr.bf16.mxu0 0
    %1280 = vmatpush2.bf16.msra.mxu0 0
    %1281 = vmatprep.subr.bf16.mxu0 0
    %1282 = vmatpush2.bf16.msra.mxu0 0
    %1283 = vmatprep.subr.bf16.mxu0 0
    %1284 = vmatpush2.bf16.msra.mxu0 0
    %1285 = vmatprep.subr.bf16.mxu0 0
    %1286 = vmatpush2.bf16.msra.mxu0 0
    %1287 = vmatprep.subr.bf16.mxu0 0
    %1288 = vmatpush2.bf16.msra.mxu0 0
    %1289 = vmatprep.mubr.bf16.mxu0 0
    %1290 = vmatmul.mubr.bf16.gmra.mxu0 %v1256
    %v1291 = vpop.f32.mrf.mxu0
    %v1292 = vadd.f32 0.0, %v1291
    %v1293 = vpop.f32.mrf.mxu0
    %v1294 = vadd.f32 0.0, %v1293
    %v1295 = vpop.f32.mrf.mxu0
    %v1296 = vpop.f32.mrf.mxu0
    %1297 = vdwg.mxu0
    %1298 = vmatprep.subr.bf16.mxu0 %v780
    %1299 = vmatpush1.bf16.msra.mxu0 %v779
    %1300 = vmatprep.subr.bf16.mxu0 %v764
    %1301 = vmatpush1.bf16.msra.mxu0 %v763
    %1302 = vmatprep.subr.bf16.mxu0 %v748
    %1303 = vmatpush1.bf16.msra.mxu0 %v747
    %1304 = vmatprep.subr.bf16.mxu0 %v732
    %1305 = vmatpush1.bf16.msra.mxu0 %v731
    %1306 = vmatprep.subr.bf16.mxu0 %v716
    %1307 = vmatpush1.bf16.msra.mxu0 %v715
    %1308 = vmatprep.subr.bf16.mxu0 %v700
    %1309 = vmatpush1.bf16.msra.mxu0 %v699
    %1310 = vmatprep.subr.bf16.mxu0 %v684
    %1311 = vmatpush1.bf16.msra.mxu0 %v683
    %1312 = vmatprep.subr.bf16.mxu0 %v668
    %1313 = vmatpush1.bf16.msra.mxu0 %v667
    %1314 = vmatprep.subr.bf16.mxu0 0
    %1315 = vmatpush2.bf16.msra.mxu0 0
    %1316 = vmatprep.subr.bf16.mxu0 0
    %1317 = vmatpush2.bf16.msra.mxu0 0
    %1318 = vmatprep.subr.bf16.mxu0 0
    %1319 = vmatpush2.bf16.msra.mxu0 0
    %1320 = vmatprep.subr.bf16.mxu0 0
    %1321 = vmatpush2.bf16.msra.mxu0 0
    %1322 = vmatprep.subr.bf16.mxu0 0
    %1323 = vmatpush2.bf16.msra.mxu0 0
    %1324 = vmatprep.subr.bf16.mxu0 0
    %1325 = vmatpush2.bf16.msra.mxu0 0
    %1326 = vmatprep.subr.bf16.mxu0 0
    %1327 = vmatpush2.bf16.msra.mxu0 0
    %1328 = vmatprep.subr.bf16.mxu0 0
    %1329 = vmatpush2.bf16.msra.mxu0 0
    %1330 = vmatprep.mubr.bf16.mxu0 0
    %1331 = vmatmul.mubr.bf16.gmra.mxu0 %v1256
    %v1332 = vpop.f32.mrf.mxu0
    %v1333 = vadd.f32 0.0, %v1332
    %v1334 = vpop.f32.mrf.mxu0
    %v1335 = vadd.f32 0.0, %v1334
    %v1336 = vpop.f32.mrf.mxu0
    %v1337 = vpop.f32.mrf.mxu0
    %1338 = vdwg.mxu0
    %1339 = vmatprep.subr.bf16.mxu0 %v782
    %1340 = vmatpush1.bf16.msra.mxu0 %v781
    %1341 = vmatprep.subr.bf16.mxu0 %v766
    %1342 = vmatpush1.bf16.msra.mxu0 %v765
    %1343 = vmatprep.subr.bf16.mxu0 %v750
    %1344 = vmatpush1.bf16.msra.mxu0 %v749
    %1345 = vmatprep.subr.bf16.mxu0 %v734
    %1346 = vmatpush1.bf16.msra.mxu0 %v733
    %1347 = vmatprep.subr.bf16.mxu0 %v718
    %1348 = vmatpush1.bf16.msra.mxu0 %v717
    %1349 = vmatprep.subr.bf16.mxu0 %v702
    %1350 = vmatpush1.bf16.msra.mxu0 %v701
    %1351 = vmatprep.subr.bf16.mxu0 %v686
    %1352 = vmatpush1.bf16.msra.mxu0 %v685
    %1353 = vmatprep.subr.bf16.mxu0 %v670
    %1354 = vmatpush1.bf16.msra.mxu0 %v669
    %1355 = vmatprep.subr.bf16.mxu0 0
    %1356 = vmatpush2.bf16.msra.mxu0 0
    %1357 = vmatprep.subr.bf16.mxu0 0
    %1358 = vmatpush2.bf16.msra.mxu0 0
    %1359 = vmatprep.subr.bf16.mxu0 0
    %1360 = vmatpush2.bf16.msra.mxu0 0
    %1361 = vmatprep.subr.bf16.mxu0 0
    %1362 = vmatpush2.bf16.msra.mxu0 0
    %1363 = vmatprep.subr.bf16.mxu0 0
    %1364 = vmatpush2.bf16.msra.mxu0 0
    %1365 = vmatprep.subr.bf16.mxu0 0
    %1366 = vmatpush2.bf16.msra.mxu0 0
    %1367 = vmatprep.subr.bf16.mxu0 0
    %1368 = vmatpush2.bf16.msra.mxu0 0
    %1369 = vmatprep.subr.bf16.mxu0 0
    %1370 = vmatpush2.bf16.msra.mxu0 0
    %1371 = vmatprep.mubr.bf16.mxu0 0
    %1372 = vmatmul.mubr.bf16.gmra.mxu0 %v1256
    %v1373 = vpop.f32.mrf.mxu0
    %v1374 = vadd.f32 0.0, %v1373
    %v1375 = vpop.f32.mrf.mxu0
    %v1376 = vadd.f32 0.0, %v1375
    %v1377 = vpop.f32.mrf.mxu0
    %v1378 = vpop.f32.mrf.mxu0
    %1379 = vdwg.mxu0
    %1380 = vmatprep.subr.bf16.mxu0 %v784
    %1381 = vmatpush1.bf16.msra.mxu0 %v783
    %1382 = vmatprep.subr.bf16.mxu0 %v768
    %1383 = vmatpush1.bf16.msra.mxu0 %v767
    %1384 = vmatprep.subr.bf16.mxu0 %v752
    %1385 = vmatpush1.bf16.msra.mxu0 %v751
    %1386 = vmatprep.subr.bf16.mxu0 %v736
    %1387 = vmatpush1.bf16.msra.mxu0 %v735
    %1388 = vmatprep.subr.bf16.mxu0 %v720
    %1389 = vmatpush1.bf16.msra.mxu0 %v719
    %1390 = vmatprep.subr.bf16.mxu0 %v704
    %1391 = vmatpush1.bf16.msra.mxu0 %v703
    %1392 = vmatprep.subr.bf16.mxu0 %v688
    %1393 = vmatpush1.bf16.msra.mxu0 %v687
    %1394 = vmatprep.subr.bf16.mxu0 %v672
    %1395 = vmatpush1.bf16.msra.mxu0 %v671
    %1396 = vmatprep.subr.bf16.mxu0 0
    %1397 = vmatpush2.bf16.msra.mxu0 0
    %1398 = vmatprep.subr.bf16.mxu0 0
    %1399 = vmatpush2.bf16.msra.mxu0 0
    %1400 = vmatprep.subr.bf16.mxu0 0
    %1401 = vmatpush2.bf16.msra.mxu0 0
    %1402 = vmatprep.subr.bf16.mxu0 0
    %1403 = vmatpush2.bf16.msra.mxu0 0
    %1404 = vmatprep.subr.bf16.mxu0 0
    %1405 = vmatpush2.bf16.msra.mxu0 0
    %1406 = vmatprep.subr.bf16.mxu0 0
    %1407 = vmatpush2.bf16.msra.mxu0 0
    %1408 = vmatprep.subr.bf16.mxu0 0
    %1409 = vmatpush2.bf16.msra.mxu0 0
    %1410 = vmatprep.subr.bf16.mxu0 0
    %1411 = vmatpush2.bf16.msra.mxu0 0
    %1412 = vmatprep.mubr.bf16.mxu0 0
    %1413 = vmatmul.mubr.bf16.gmra.mxu0 %v1256
    %v1414 = vpop.f32.mrf.mxu0
    %v1415 = vadd.f32 0.0, %v1414
    %v1416 = vpop.f32.mrf.mxu0
    %v1417 = vadd.f32 0.0, %v1416
    %v1418 = vpop.f32.mrf.mxu0
    %v1419 = vpop.f32.mrf.mxu0
    %1420 = vdwg.mxu0
    %1421 = vmatprep.subr.bf16.mxu0 %v786
    %1422 = vmatpush1.bf16.msra.mxu0 %v785
    %1423 = vmatprep.subr.bf16.mxu0 %v770
    %1424 = vmatpush1.bf16.msra.mxu0 %v769
    %1425 = vmatprep.subr.bf16.mxu0 %v754
    %1426 = vmatpush1.bf16.msra.mxu0 %v753
    %1427 = vmatprep.subr.bf16.mxu0 %v738
    %1428 = vmatpush1.bf16.msra.mxu0 %v737
    %1429 = vmatprep.subr.bf16.mxu0 %v722
    %1430 = vmatpush1.bf16.msra.mxu0 %v721
    %1431 = vmatprep.subr.bf16.mxu0 %v706
    %1432 = vmatpush1.bf16.msra.mxu0 %v705
    %1433 = vmatprep.subr.bf16.mxu0 %v690
    %1434 = vmatpush1.bf16.msra.mxu0 %v689
    %1435 = vmatprep.subr.bf16.mxu0 %v674
    %1436 = vmatpush1.bf16.msra.mxu0 %v673
    %1437 = vmatprep.subr.bf16.mxu0 0
    %1438 = vmatpush2.bf16.msra.mxu0 0
    %1439 = vmatprep.subr.bf16.mxu0 0
    %1440 = vmatpush2.bf16.msra.mxu0 0
    %1441 = vmatprep.subr.bf16.mxu0 0
    %1442 = vmatpush2.bf16.msra.mxu0 0
    %1443 = vmatprep.subr.bf16.mxu0 0
    %1444 = vmatpush2.bf16.msra.mxu0 0
    %1445 = vmatprep.subr.bf16.mxu0 0
    %1446 = vmatpush2.bf16.msra.mxu0 0
    %1447 = vmatprep.subr.bf16.mxu0 0
    %1448 = vmatpush2.bf16.msra.mxu0 0
    %1449 = vmatprep.subr.bf16.mxu0 0
    %1450 = vmatpush2.bf16.msra.mxu0 0
    %1451 = vmatprep.subr.bf16.mxu0 0
    %1452 = vmatpush2.bf16.msra.mxu0 0
    %1453 = vmatprep.mubr.bf16.mxu0 0
    %1454 = vmatmul.mubr.bf16.gmra.mxu0 %v1256
    %v1455 = vpop.f32.mrf.mxu0
    %v1456 = vadd.f32 0.0, %v1455
    %v1457 = vpop.f32.mrf.mxu0
    %v1458 = vadd.f32 0.0, %v1457
    %v1459 = vpop.f32.mrf.mxu0
    %v1460 = vpop.f32.mrf.mxu0
    %1461 = vdwg.mxu0
    %1462 = vmatprep.subr.bf16.mxu0 %v788
    %1463 = vmatpush1.bf16.msra.mxu0 %v787
    %1464 = vmatprep.subr.bf16.mxu0 %v772
    %1465 = vmatpush1.bf16.msra.mxu0 %v771
    %1466 = vmatprep.subr.bf16.mxu0 %v756
    %1467 = vmatpush1.bf16.msra.mxu0 %v755
    %1468 = vmatprep.subr.bf16.mxu0 %v740
    %1469 = vmatpush1.bf16.msra.mxu0 %v739
    %1470 = vmatprep.subr.bf16.mxu0 %v724
    %1471 = vmatpush1.bf16.msra.mxu0 %v723
    %1472 = vmatprep.subr.bf16.mxu0 %v708
    %1473 = vmatpush1.bf16.msra.mxu0 %v707
    %1474 = vmatprep.subr.bf16.mxu0 %v692
    %1475 = vmatpush1.bf16.msra.mxu0 %v691
    %1476 = vmatprep.subr.bf16.mxu0 %v676
    %1477 = vmatpush1.bf16.msra.mxu0 %v675
    %1478 = vmatprep.subr.bf16.mxu0 0
    %1479 = vmatpush2.bf16.msra.mxu0 0
    %1480 = vmatprep.subr.bf16.mxu0 0
    %1481 = vmatpush2.bf16.msra.mxu0 0
    %1482 = vmatprep.subr.bf16.mxu0 0
    %1483 = vmatpush2.bf16.msra.mxu0 0
    %1484 = vmatprep.subr.bf16.mxu0 0
    %1485 = vmatpush2.bf16.msra.mxu0 0
    %1486 = vmatprep.subr.bf16.mxu0 0
    %1487 = vmatpush2.bf16.msra.mxu0 0
    %1488 = vmatprep.subr.bf16.mxu0 0
    %1489 = vmatpush2.bf16.msra.mxu0 0
    %1490 = vmatprep.subr.bf16.mxu0 0
    %1491 = vmatpush2.bf16.msra.mxu0 0
    %1492 = vmatprep.subr.bf16.mxu0 0
    %1493 = vmatpush2.bf16.msra.mxu0 0
    %1494 = vmatprep.mubr.bf16.mxu0 0
    %1495 = vmatmul.mubr.bf16.gmra.mxu0 %v1256
    %v1496 = vpop.f32.mrf.mxu0
    %v1497 = vadd.f32 0.0, %v1496
    %v1498 = vpop.f32.mrf.mxu0
    %v1499 = vadd.f32 0.0, %v1498
    %v1500 = vpop.f32.mrf.mxu0
    %v1501 = vpop.f32.mrf.mxu0
    %1502 = vdwg.mxu0
    %1503 = vmatprep.subr.bf16.mxu0 %v790
    %1504 = vmatpush1.bf16.msra.mxu0 %v789
    %1505 = vmatprep.subr.bf16.mxu0 %v774
    %1506 = vmatpush1.bf16.msra.mxu0 %v773
    %1507 = vmatprep.subr.bf16.mxu0 %v758
    %1508 = vmatpush1.bf16.msra.mxu0 %v757
    %1509 = vmatprep.subr.bf16.mxu0 %v742
    %1510 = vmatpush1.bf16.msra.mxu0 %v741
    %1511 = vmatprep.subr.bf16.mxu0 %v726
    %1512 = vmatpush1.bf16.msra.mxu0 %v725
    %1513 = vmatprep.subr.bf16.mxu0 %v710
    %1514 = vmatpush1.bf16.msra.mxu0 %v709
    %1515 = vmatprep.subr.bf16.mxu0 %v694
    %1516 = vmatpush1.bf16.msra.mxu0 %v693
    %1517 = vmatprep.subr.bf16.mxu0 %v678
    %1518 = vmatpush1.bf16.msra.mxu0 %v677
    %1519 = vmatprep.subr.bf16.mxu0 0
    %1520 = vmatpush2.bf16.msra.mxu0 0
    %1521 = vmatprep.subr.bf16.mxu0 0
    %1522 = vmatpush2.bf16.msra.mxu0 0
    %1523 = vmatprep.subr.bf16.mxu0 0
    %1524 = vmatpush2.bf16.msra.mxu0 0
    %1525 = vmatprep.subr.bf16.mxu0 0
    %1526 = vmatpush2.bf16.msra.mxu0 0
    %1527 = vmatprep.subr.bf16.mxu0 0
    %1528 = vmatpush2.bf16.msra.mxu0 0
    %1529 = vmatprep.subr.bf16.mxu0 0
    %1530 = vmatpush2.bf16.msra.mxu0 0
    %1531 = vmatprep.subr.bf16.mxu0 0
    %1532 = vmatpush2.bf16.msra.mxu0 0
    %1533 = vmatprep.subr.bf16.mxu0 0
    %1534 = vmatpush2.bf16.msra.mxu0 0
    %1535 = vmatprep.mubr.bf16.mxu0 0
    %1536 = vmatmul.mubr.bf16.gmra.mxu0 %v1256
    %v1537 = vpop.f32.mrf.mxu0
    %v1538 = vadd.f32 0.0, %v1537
    %v1539 = vpop.f32.mrf.mxu0
    %v1540 = vadd.f32 0.0, %v1539
    %v1541 = vpop.f32.mrf.mxu0
    %v1542 = vpop.f32.mrf.mxu0
    %1543 = vdwg.mxu0
    %1544 = vmatprep.subr.bf16.mxu0 %v792
    %1545 = vmatpush1.bf16.msra.mxu0 %v791
    %1546 = vmatprep.subr.bf16.mxu0 %v776
    %1547 = vmatpush1.bf16.msra.mxu0 %v775
    %1548 = vmatprep.subr.bf16.mxu0 %v760
    %1549 = vmatpush1.bf16.msra.mxu0 %v759
    %1550 = vmatprep.subr.bf16.mxu0 %v744
    %1551 = vmatpush1.bf16.msra.mxu0 %v743
    %1552 = vmatprep.subr.bf16.mxu0 %v728
    %1553 = vmatpush1.bf16.msra.mxu0 %v727
    %1554 = vmatprep.subr.bf16.mxu0 %v712
    %1555 = vmatpush1.bf16.msra.mxu0 %v711
    %1556 = vmatprep.subr.bf16.mxu0 %v696
    %1557 = vmatpush1.bf16.msra.mxu0 %v695
    %1558 = vmatprep.subr.bf16.mxu0 %v680
    %1559 = vmatpush1.bf16.msra.mxu0 %v679
    %1560 = vmatprep.subr.bf16.mxu0 0
    %1561 = vmatpush2.bf16.msra.mxu0 0
    %1562 = vmatprep.subr.bf16.mxu0 0
    %1563 = vmatpush2.bf16.msra.mxu0 0
    %1564 = vmatprep.subr.bf16.mxu0 0
    %1565 = vmatpush2.bf16.msra.mxu0 0
    %1566 = vmatprep.subr.bf16.mxu0 0
    %1567 = vmatpush2.bf16.msra.mxu0 0
    %1568 = vmatprep.subr.bf16.mxu0 0
    %1569 = vmatpush2.bf16.msra.mxu0 0
    %1570 = vmatprep.subr.bf16.mxu0 0
    %1571 = vmatpush2.bf16.msra.mxu0 0
    %1572 = vmatprep.subr.bf16.mxu0 0
    %1573 = vmatpush2.bf16.msra.mxu0 0
    %1574 = vmatprep.subr.bf16.mxu0 0
    %1575 = vmatpush2.bf16.msra.mxu0 0
    %1576 = vmatprep.mubr.bf16.mxu0 0
    %1577 = vmatmul.mubr.bf16.gmra.mxu0 %v1256
    %v1578 = vpop.f32.mrf.mxu0
    %v1579 = vadd.f32 0.0, %v1578
    %v1580 = vpop.f32.mrf.mxu0
    %v1581 = vadd.f32 0.0, %v1580
    %v1582 = vpop.f32.mrf.mxu0
    %v1583 = vpop.f32.mrf.mxu0
    %1584 = vdwg.mxu0
    %v1585 = vmul.f32 %v1292, %v1292
    %v1586 = vmul.f32 %v1294, %v1294
    %v1587 = vmul.f32 %v1333, %v1333
    %v1588 = vmul.f32 %v1335, %v1335
    %v1589 = vmul.f32 %v1374, %v1374
    %v1590 = vmul.f32 %v1376, %v1376
    %v1591 = vmul.f32 %v1415, %v1415
    %v1592 = vmul.f32 %v1417, %v1417
    %v1593 = vmul.f32 %v1456, %v1456
    %v1594 = vmul.f32 %v1458, %v1458
    %v1595 = vmul.f32 %v1497, %v1497
    %v1596 = vmul.f32 %v1499, %v1499
    %v1597 = vmul.f32 %v1538, %v1538
    %v1598 = vmul.f32 %v1540, %v1540
    %v1599 = vmul.f32 %v1579, %v1579
    %v1600 = vmul.f32 %v1581, %v1581
    %v1601 = vsel %vm1242, %v1585, 0.0
    %v1602 = vsel %vm1242, %v1586, 0.0
    %v1603 = vadd.f32 %v1601, %v1602
    %v1604 = vsel %vm1242, %v1587, 0.0
    %v1605 = vadd.f32 %v1603, %v1604
    %v1606 = vsel %vm1242, %v1588, 0.0
    %v1607 = vadd.f32 %v1605, %v1606
    %v1608 = vsel %vm1242, %v1589, 0.0
    %v1609 = vadd.f32 %v1607, %v1608
    %v1610 = vsel %vm1242, %v1590, 0.0
    %v1611 = vadd.f32 %v1609, %v1610
    %v1612 = vsel %vm1242, %v1591, 0.0
    %v1613 = vadd.f32 %v1611, %v1612
    %v1614 = vsel %vm1242, %v1592, 0.0
    %v1615 = vadd.f32 %v1613, %v1614
    %v1616 = vsel %vm1242, %v1593, 0.0
    %v1617 = vadd.f32 %v1615, %v1616
    %v1618 = vsel %vm1242, %v1594, 0.0
    %v1619 = vadd.f32 %v1617, %v1618
    %v1620 = vsel %vm1242, %v1595, 0.0
    %v1621 = vadd.f32 %v1619, %v1620
    %v1622 = vsel %vm1242, %v1596, 0.0
    %v1623 = vadd.f32 %v1621, %v1622
    %v1624 = vsel %vm1242, %v1597, 0.0
    %v1625 = vadd.f32 %v1623, %v1624
    %v1626 = vsel %vm1242, %v1598, 0.0
    %v1627 = vadd.f32 %v1625, %v1626
    %v1628 = vsel %vm1242, %v1599, 0.0
    %v1629 = vadd.f32 %v1627, %v1628
    %v1630 = vsel %vm1242, %v1600, 0.0
    %v1631 = vadd.f32 %v1629, %v1630
    %1632 = vadd.xlane.f32.xlu0 %v1631
    %v1633 = vpop.xlane.xlu0 %1632
    %v1634 = vrsqrt.pop %v1633
    %v1635 = vmul.f32 %v1633, %v1634
    %vm1636 = vcmp.eq.f32.partialorder %v1633, inf
    %v1637 = vsel %vm1636, %v1633, %v1635
    %vm1638 = vcmp.eq.f32.partialorder %v1633, 0.0
    %v1639 = vand.u32 %v1633, 2147483648
    %v1640 = vsel %vm1638, %v1639, %v1637
    %v1641 = vmax.f32 %v1640, 1e-12
    %v1642 = vrcp.pop %v1641
    %v1643 = vmul.f32 %v1292, %v1642
    %v1644 = vmul.f32 %v1294, %v1642
    %v1645 = vmul.f32 %v1333, %v1642
    %v1646 = vmul.f32 %v1335, %v1642
    %v1647 = vmul.f32 %v1374, %v1642
    %v1648 = vmul.f32 %v1376, %v1642
    %v1649 = vmul.f32 %v1415, %v1642
    %v1650 = vmul.f32 %v1417, %v1642
    %v1651 = vmul.f32 %v1456, %v1642
    %v1652 = vmul.f32 %v1458, %v1642
    %v1653 = vmul.f32 %v1497, %v1642
    %v1654 = vmul.f32 %v1499, %v1642
    %v1655 = vmul.f32 %v1538, %v1642
    %v1656 = vmul.f32 %v1540, %v1642
    %v1657 = vmul.f32 %v1579, %v1642
    %v1658 = vmul.f32 %v1581, %v1642
    %v1659 = vmul.f32 %v1643, %v1292
    %v1660 = vmul.f32 %v1644, %v1294
    %v1661 = vmul.f32 %v1645, %v1333
    %v1662 = vmul.f32 %v1646, %v1335
    %v1663 = vmul.f32 %v1647, %v1374
    %v1664 = vmul.f32 %v1648, %v1376
    %v1665 = vmul.f32 %v1649, %v1415
    %v1666 = vmul.f32 %v1650, %v1417
    %v1667 = vmul.f32 %v1651, %v1456
    %v1668 = vmul.f32 %v1652, %v1458
    %v1669 = vmul.f32 %v1653, %v1497
    %v1670 = vmul.f32 %v1654, %v1499
    %v1671 = vmul.f32 %v1655, %v1538
    %v1672 = vmul.f32 %v1656, %v1540
    %v1673 = vmul.f32 %v1657, %v1579
    %v1674 = vmul.f32 %v1658, %v1581
    %v1675 = vsel %vm1242, %v1659, 0.0
    %v1676 = vsel %vm1242, %v1660, 0.0
    %v1677 = vadd.f32 %v1675, %v1676
    %v1678 = vsel %vm1242, %v1661, 0.0
    %v1679 = vadd.f32 %v1677, %v1678
    %v1680 = vsel %vm1242, %v1662, 0.0
    %v1681 = vadd.f32 %v1679, %v1680
    %v1682 = vsel %vm1242, %v1663, 0.0
    %v1683 = vadd.f32 %v1681, %v1682
    %v1684 = vsel %vm1242, %v1664, 0.0
    %v1685 = vadd.f32 %v1683, %v1684
    %v1686 = vsel %vm1242, %v1665, 0.0
    %v1687 = vadd.f32 %v1685, %v1686
    %v1688 = vsel %vm1242, %v1666, 0.0
    %v1689 = vadd.f32 %v1687, %v1688
    %v1690 = vsel %vm1242, %v1667, 0.0
    %v1691 = vadd.f32 %v1689, %v1690
    %v1692 = vsel %vm1242, %v1668, 0.0
    %v1693 = vadd.f32 %v1691, %v1692
    %v1694 = vsel %vm1242, %v1669, 0.0
    %v1695 = vadd.f32 %v1693, %v1694
    %v1696 = vsel %vm1242, %v1670, 0.0
    %v1697 = vadd.f32 %v1695, %v1696
    %v1698 = vsel %vm1242, %v1671, 0.0
    %v1699 = vadd.f32 %v1697, %v1698
    %v1700 = vsel %vm1242, %v1672, 0.0
    %v1701 = vadd.f32 %v1699, %v1700
    %v1702 = vsel %vm1242, %v1673, 0.0
    %v1703 = vadd.f32 %v1701, %v1702
    %v1704 = vsel %vm1242, %v1674, 0.0
    %v1705 = vadd.f32 %v1703, %v1704
    %1706 = vadd.xlane.f32.xlu0 %v1705
    %v1707 = vpop.xlane.xlu0 %1706
    %v1708 = vrcp.pop %v1707
    %v1709 = vmul.f32 1.0, %v1708
    %v1726 = vcombine.low %v1643, %v1644
    %v1727 = vcombine.low %v1645, %v1646
    %v1728 = vcombine.low %v1647, %v1648
    %v1729 = vcombine.low %v1649, %v1650
    %v1731 = vunpack.c.l.s4 1966171168
    %v1732 = vunpack.c.0.s8 %v1731
    %v1733 = vlaneseq
    %v1734 = vshrl.u32 %v1733, 7
    %v1735 = vsub.s32 %v1732, %v1734
    %v1736 = vrot.slane %v1726, %v1735
    %v1738 = vunpack.c.l.s4 1966171168
    %v1739 = vunpack.c.0.s8 %v1738
    %v1740 = vlaneseq
    %v1741 = vshrl.u32 %v1740, 7
    %v1742 = vsub.s32 %v1739, %v1741
    %v1743 = vrot.slane %v1727, %v1742
    %v1745 = vunpack.c.l.s4 1966171168
    %v1746 = vunpack.c.0.s8 %v1745
    %v1747 = vlaneseq
    %v1748 = vshrl.u32 %v1747, 7
    %v1749 = vsub.s32 %v1746, %v1748
    %v1750 = vrot.slane %v1728, %v1749
    %v1752 = vunpack.c.l.s4 1966171168
    %v1753 = vunpack.c.0.s8 %v1752
    %v1754 = vlaneseq
    %v1755 = vshrl.u32 %v1754, 7
    %v1756 = vsub.s32 %v1753, %v1755
    %v1757 = vrot.slane %v1729, %v1756
    %v1758 = vcombine.low %v1736, %v1743
    %v1759 = vcombine.low %v1750, %v1757
    %v1761 = vunpack.c.l.s4 1966171168
    %v1762 = vunpack.c.0.s8 %v1761
    %v1763 = vlaneseq
    %v1764 = vshrl.u32 %v1763, 7
    %v1765 = vsub.s32 %v1762, %v1764
    %v1766 = vrot.slane %v1758, %v1765
    %v1768 = vunpack.c.l.s4 1966171168
    %v1769 = vunpack.c.0.s8 %v1768
    %v1770 = vlaneseq
    %v1771 = vshrl.u32 %v1770, 7
    %v1772 = vsub.s32 %v1769, %v1771
    %v1773 = vrot.slane %v1759, %v1772
    %v1774 = vcombine.low %v1766, %v1773
    %v1775 = vcombine.low %v1651, %v1652
    %v1776 = vcombine.low %v1653, %v1654
    %v1777 = vcombine.low %v1655, %v1656
    %v1778 = vcombine.low %v1657, %v1658
    %v1780 = vunpack.c.l.s4 1966171168
    %v1781 = vunpack.c.0.s8 %v1780
    %v1782 = vlaneseq
    %v1783 = vshrl.u32 %v1782, 7
    %v1784 = vsub.s32 %v1781, %v1783
    %v1785 = vrot.slane %v1775, %v1784
    %v1787 = vunpack.c.l.s4 1966171168
    %v1788 = vunpack.c.0.s8 %v1787
    %v1789 = vlaneseq
    %v1790 = vshrl.u32 %v1789, 7
    %v1791 = vsub.s32 %v1788, %v1790
    %v1792 = vrot.slane %v1776, %v1791
    %v1794 = vunpack.c.l.s4 1966171168
    %v1795 = vunpack.c.0.s8 %v1794
    %v1796 = vlaneseq
    %v1797 = vshrl.u32 %v1796, 7
    %v1798 = vsub.s32 %v1795, %v1797
    %v1799 = vrot.slane %v1777, %v1798
    %v1801 = vunpack.c.l.s4 1966171168
    %v1802 = vunpack.c.0.s8 %v1801
    %v1803 = vlaneseq
    %v1804 = vshrl.u32 %v1803, 7
    %v1805 = vsub.s32 %v1802, %v1804
    %v1806 = vrot.slane %v1778, %v1805
    %v1807 = vcombine.low %v1785, %v1792
    %v1808 = vcombine.low %v1799, %v1806
    %v1810 = vunpack.c.l.s4 1966171168
    %v1811 = vunpack.c.0.s8 %v1810
    %v1812 = vlaneseq
    %v1813 = vshrl.u32 %v1812, 7
    %v1814 = vsub.s32 %v1811, %v1813
    %v1815 = vrot.slane %v1807, %v1814
    %v1817 = vunpack.c.l.s4 1966171168
    %v1818 = vunpack.c.0.s8 %v1817
    %v1819 = vlaneseq
    %v1820 = vshrl.u32 %v1819, 7
    %v1821 = vsub.s32 %v1818, %v1820
    %v1822 = vrot.slane %v1808, %v1821
    %v1823 = vcombine.low %v1815, %v1822
    %1826 = vst [vmem:[#allocation5] sm:$0xff] %v1774
    %1827 = vst [vmem:[#allocation5 + $0x8] sm:$0xff] %v1823
    %v1828 = vld [vmem:[%s1] sm:$0xf]
    %1829 = vmatprep.subr.bf16.mxu0 %v778
    %1830 = vmatpush1.bf16.msra.mxu0 %v777
    %1831 = vmatprep.subr.bf16.mxu0 %v762
    %1832 = vmatpush1.bf16.msra.mxu0 %v761
    %1833 = vmatprep.subr.bf16.mxu0 %v746
    %1834 = vmatpush1.bf16.msra.mxu0 %v745
    %1835 = vmatprep.subr.bf16.mxu0 %v730
    %1836 = vmatpush1.bf16.msra.mxu0 %v729
    %1837 = vmatprep.subr.bf16.mxu0 %v714
    %1838 = vmatpush1.bf16.msra.mxu0 %v713
    %1839 = vmatprep.subr.bf16.mxu0 %v698
    %1840 = vmatpush1.bf16.msra.mxu0 %v697
    %1841 = vmatprep.subr.bf16.mxu0 %v682
    %1842 = vmatpush1.bf16.msra.mxu0 %v681
    %1843 = vmatprep.subr.bf16.mxu0 %v666
    %1844 = vmatpush1.bf16.msra.mxu0 %v665
    %1845 = vmatprep.subr.bf16.mxu0 0
    %1846 = vmatpush2.bf16.msra.mxu0 0
    %1847 = vmatprep.subr.bf16.mxu0 0
    %1848 = vmatpush2.bf16.msra.mxu0 0
    %1849 = vmatprep.subr.bf16.mxu0 0
    %1850 = vmatpush2.bf16.msra.mxu0 0
    %1851 = vmatprep.subr.bf16.mxu0 0
    %1852 = vmatpush2.bf16.msra.mxu0 0
    %1853 = vmatprep.subr.bf16.mxu0 0
    %1854 = vmatpush2.bf16.msra.mxu0 0
    %1855 = vmatprep.subr.bf16.mxu0 0
    %1856 = vmatpush2.bf16.msra.mxu0 0
    %1857 = vmatprep.subr.bf16.mxu0 0
    %1858 = vmatpush2.bf16.msra.mxu0 0
    %1859 = vmatprep.subr.bf16.mxu0 0
    %1860 = vmatpush2.bf16.msra.mxu0 0
    %1861 = vmatprep.mubr.bf16.mxu0 0
    %1862 = vmatmul.mubr.bf16.gmra.mxu0 %v1828
    %v1863 = vpop.f32.mrf.mxu0
    %v1864 = vadd.f32 0.0, %v1863
    %v1865 = vpop.f32.mrf.mxu0
    %v1866 = vadd.f32 0.0, %v1865
    %v1867 = vpop.f32.mrf.mxu0
    %v1868 = vpop.f32.mrf.mxu0
    %1869 = vdwg.mxu0
    %1870 = vmatprep.subr.bf16.mxu0 %v780
    %1871 = vmatpush1.bf16.msra.mxu0 %v779
    %1872 = vmatprep.subr.bf16.mxu0 %v764
    %1873 = vmatpush1.bf16.msra.mxu0 %v763
    %1874 = vmatprep.subr.bf16.mxu0 %v748
    %1875 = vmatpush1.bf16.msra.mxu0 %v747
    %1876 = vmatprep.subr.bf16.mxu0 %v732
    %1877 = vmatpush1.bf16.msra.mxu0 %v731
    %1878 = vmatprep.subr.bf16.mxu0 %v716
    %1879 = vmatpush1.bf16.msra.mxu0 %v715
    %1880 = vmatprep.subr.bf16.mxu0 %v700
    %1881 = vmatpush1.bf16.msra.mxu0 %v699
    %1882 = vmatprep.subr.bf16.mxu0 %v684
    %1883 = vmatpush1.bf16.msra.mxu0 %v683
    %1884 = vmatprep.subr.bf16.mxu0 %v668
    %1885 = vmatpush1.bf16.msra.mxu0 %v667
    %1886 = vmatprep.subr.bf16.mxu0 0
    %1887 = vmatpush2.bf16.msra.mxu0 0
    %1888 = vmatprep.subr.bf16.mxu0 0
    %1889 = vmatpush2.bf16.msra.mxu0 0
    %1890 = vmatprep.subr.bf16.mxu0 0
    %1891 = vmatpush2.bf16.msra.mxu0 0
    %1892 = vmatprep.subr.bf16.mxu0 0
    %1893 = vmatpush2.bf16.msra.mxu0 0
    %1894 = vmatprep.subr.bf16.mxu0 0
    %1895 = vmatpush2.bf16.msra.mxu0 0
    %1896 = vmatprep.subr.bf16.mxu0 0
    %1897 = vmatpush2.bf16.msra.mxu0 0
    %1898 = vmatprep.subr.bf16.mxu0 0
    %1899 = vmatpush2.bf16.msra.mxu0 0
    %1900 = vmatprep.subr.bf16.mxu0 0
    %1901 = vmatpush2.bf16.msra.mxu0 0
    %1902 = vmatprep.mubr.bf16.mxu0 0
    %1903 = vmatmul.mubr.bf16.gmra.mxu0 %v1828
    %v1904 = vpop.f32.mrf.mxu0
    %v1905 = vadd.f32 0.0, %v1904
    %v1906 = vpop.f32.mrf.mxu0
    %v1907 = vadd.f32 0.0, %v1906
    %v1908 = vpop.f32.mrf.mxu0
    %v1909 = vpop.f32.mrf.mxu0
    %1910 = vdwg.mxu0
    %1911 = vmatprep.subr.bf16.mxu0 %v782
    %1912 = vmatpush1.bf16.msra.mxu0 %v781
    %1913 = vmatprep.subr.bf16.mxu0 %v766
    %1914 = vmatpush1.bf16.msra.mxu0 %v765
    %1915 = vmatprep.subr.bf16.mxu0 %v750
    %1916 = vmatpush1.bf16.msra.mxu0 %v749
    %1917 = vmatprep.subr.bf16.mxu0 %v734
    %1918 = vmatpush1.bf16.msra.mxu0 %v733
    %1919 = vmatprep.subr.bf16.mxu0 %v718
    %1920 = vmatpush1.bf16.msra.mxu0 %v717
    %1921 = vmatprep.subr.bf16.mxu0 %v702
    %1922 = vmatpush1.bf16.msra.mxu0 %v701
    %1923 = vmatprep.subr.bf16.mxu0 %v686
    %1924 = vmatpush1.bf16.msra.mxu0 %v685
    %1925 = vmatprep.subr.bf16.mxu0 %v670
    %1926 = vmatpush1.bf16.msra.mxu0 %v669
    %1927 = vmatprep.subr.bf16.mxu0 0
    %1928 = vmatpush2.bf16.msra.mxu0 0
    %1929 = vmatprep.subr.bf16.mxu0 0
    %1930 = vmatpush2.bf16.msra.mxu0 0
    %1931 = vmatprep.subr.bf16.mxu0 0
    %1932 = vmatpush2.bf16.msra.mxu0 0
    %1933 = vmatprep.subr.bf16.mxu0 0
    %1934 = vmatpush2.bf16.msra.mxu0 0
    %1935 = vmatprep.subr.bf16.mxu0 0
    %1936 = vmatpush2.bf16.msra.mxu0 0
    %1937 = vmatprep.subr.bf16.mxu0 0
    %1938 = vmatpush2.bf16.msra.mxu0 0
    %1939 = vmatprep.subr.bf16.mxu0 0
    %1940 = vmatpush2.bf16.msra.mxu0 0
    %1941 = vmatprep.subr.bf16.mxu0 0
    %1942 = vmatpush2.bf16.msra.mxu0 0
    %1943 = vmatprep.mubr.bf16.mxu0 0
    %1944 = vmatmul.mubr.bf16.gmra.mxu0 %v1828
    %v1945 = vpop.f32.mrf.mxu0
    %v1946 = vadd.f32 0.0, %v1945
    %v1947 = vpop.f32.mrf.mxu0
    %v1948 = vadd.f32 0.0, %v1947
    %v1949 = vpop.f32.mrf.mxu0
    %v1950 = vpop.f32.mrf.mxu0
    %1951 = vdwg.mxu0
    %1952 = vmatprep.subr.bf16.mxu0 %v784
    %1953 = vmatpush1.bf16.msra.mxu0 %v783
    %1954 = vmatprep.subr.bf16.mxu0 %v768
    %1955 = vmatpush1.bf16.msra.mxu0 %v767
    %1956 = vmatprep.subr.bf16.mxu0 %v752
    %1957 = vmatpush1.bf16.msra.mxu0 %v751
    %1958 = vmatprep.subr.bf16.mxu0 %v736
    %1959 = vmatpush1.bf16.msra.mxu0 %v735
    %1960 = vmatprep.subr.bf16.mxu0 %v720
    %1961 = vmatpush1.bf16.msra.mxu0 %v719
    %1962 = vmatprep.subr.bf16.mxu0 %v704
    %1963 = vmatpush1.bf16.msra.mxu0 %v703
    %1964 = vmatprep.subr.bf16.mxu0 %v688
    %1965 = vmatpush1.bf16.msra.mxu0 %v687
    %1966 = vmatprep.subr.bf16.mxu0 %v672
    %1967 = vmatpush1.bf16.msra.mxu0 %v671
    %1968 = vmatprep.subr.bf16.mxu0 0
    %1969 = vmatpush2.bf16.msra.mxu0 0
    %1970 = vmatprep.subr.bf16.mxu0 0
    %1971 = vmatpush2.bf16.msra.mxu0 0
    %1972 = vmatprep.subr.bf16.mxu0 0
    %1973 = vmatpush2.bf16.msra.mxu0 0
    %1974 = vmatprep.subr.bf16.mxu0 0
    %1975 = vmatpush2.bf16.msra.mxu0 0
    %1976 = vmatprep.subr.bf16.mxu0 0
    %1977 = vmatpush2.bf16.msra.mxu0 0
    %1978 = vmatprep.subr.bf16.mxu0 0
    %1979 = vmatpush2.bf16.msra.mxu0 0
    %1980 = vmatprep.subr.bf16.mxu0 0
    %1981 = vmatpush2.bf16.msra.mxu0 0
    %1982 = vmatprep.subr.bf16.mxu0 0
    %1983 = vmatpush2.bf16.msra.mxu0 0
    %1984 = vmatprep.mubr.bf16.mxu0 0
    %1985 = vmatmul.mubr.bf16.gmra.mxu0 %v1828
    %v1986 = vpop.f32.mrf.mxu0
    %v1987 = vadd.f32 0.0, %v1986
    %v1988 = vpop.f32.mrf.mxu0
    %v1989 = vadd.f32 0.0, %v1988
    %v1990 = vpop.f32.mrf.mxu0
    %v1991 = vpop.f32.mrf.mxu0
    %1992 = vdwg.mxu0
    %1993 = vmatprep.subr.bf16.mxu0 %v786
    %1994 = vmatpush1.bf16.msra.mxu0 %v785
    %1995 = vmatprep.subr.bf16.mxu0 %v770
    %1996 = vmatpush1.bf16.msra.mxu0 %v769
    %1997 = vmatprep.subr.bf16.mxu0 %v754
    %1998 = vmatpush1.bf16.msra.mxu0 %v753
    %1999 = vmatprep.subr.bf16.mxu0 %v738
    %2000 = vmatpush1.bf16.msra.mxu0 %v737
    %2001 = vmatprep.subr.bf16.mxu0 %v722
    %2002 = vmatpush1.bf16.msra.mxu0 %v721
    %2003 = vmatprep.subr.bf16.mxu0 %v706
    %2004 = vmatpush1.bf16.msra.mxu0 %v705
    %2005 = vmatprep.subr.bf16.mxu0 %v690
    %2006 = vmatpush1.bf16.msra.mxu0 %v689
    %2007 = vmatprep.subr.bf16.mxu0 %v674
    %2008 = vmatpush1.bf16.msra.mxu0 %v673
    %2009 = vmatprep.subr.bf16.mxu0 0
    %2010 = vmatpush2.bf16.msra.mxu0 0
    %2011 = vmatprep.subr.bf16.mxu0 0
    %2012 = vmatpush2.bf16.msra.mxu0 0
    %2013 = vmatprep.subr.bf16.mxu0 0
    %2014 = vmatpush2.bf16.msra.mxu0 0
    %2015 = vmatprep.subr.bf16.mxu0 0
    %2016 = vmatpush2.bf16.msra.mxu0 0
    %2017 = vmatprep.subr.bf16.mxu0 0
    %2018 = vmatpush2.bf16.msra.mxu0 0
    %2019 = vmatprep.subr.bf16.mxu0 0
    %2020 = vmatpush2.bf16.msra.mxu0 0
    %2021 = vmatprep.subr.bf16.mxu0 0
    %2022 = vmatpush2.bf16.msra.mxu0 0
    %2023 = vmatprep.subr.bf16.mxu0 0
    %2024 = vmatpush2.bf16.msra.mxu0 0
    %2025 = vmatprep.mubr.bf16.mxu0 0
    %2026 = vmatmul.mubr.bf16.gmra.mxu0 %v1828
    %v2027 = vpop.f32.mrf.mxu0
    %v2028 = vadd.f32 0.0, %v2027
    %v2029 = vpop.f32.mrf.mxu0
    %v2030 = vadd.f32 0.0, %v2029
    %v2031 = vpop.f32.mrf.mxu0
    %v2032 = vpop.f32.mrf.mxu0
    %2033 = vdwg.mxu0
    %2034 = vmatprep.subr.bf16.mxu0 %v788
    %2035 = vmatpush1.bf16.msra.mxu0 %v787
    %2036 = vmatprep.subr.bf16.mxu0 %v772
    %2037 = vmatpush1.bf16.msra.mxu0 %v771
    %2038 = vmatprep.subr.bf16.mxu0 %v756
    %2039 = vmatpush1.bf16.msra.mxu0 %v755
    %2040 = vmatprep.subr.bf16.mxu0 %v740
    %2041 = vmatpush1.bf16.msra.mxu0 %v739
    %2042 = vmatprep.subr.bf16.mxu0 %v724
    %2043 = vmatpush1.bf16.msra.mxu0 %v723
    %2044 = vmatprep.subr.bf16.mxu0 %v708
    %2045 = vmatpush1.bf16.msra.mxu0 %v707
    %2046 = vmatprep.subr.bf16.mxu0 %v692
    %2047 = vmatpush1.bf16.msra.mxu0 %v691
    %2048 = vmatprep.subr.bf16.mxu0 %v676
    %2049 = vmatpush1.bf16.msra.mxu0 %v675
    %2050 = vmatprep.subr.bf16.mxu0 0
    %2051 = vmatpush2.bf16.msra.mxu0 0
    %2052 = vmatprep.subr.bf16.mxu0 0
    %2053 = vmatpush2.bf16.msra.mxu0 0
    %2054 = vmatprep.subr.bf16.mxu0 0
    %2055 = vmatpush2.bf16.msra.mxu0 0
    %2056 = vmatprep.subr.bf16.mxu0 0
    %2057 = vmatpush2.bf16.msra.mxu0 0
    %2058 = vmatprep.subr.bf16.mxu0 0
    %2059 = vmatpush2.bf16.msra.mxu0 0
    %2060 = vmatprep.subr.bf16.mxu0 0
    %2061 = vmatpush2.bf16.msra.mxu0 0
    %2062 = vmatprep.subr.bf16.mxu0 0
    %2063 = vmatpush2.bf16.msra.mxu0 0
    %2064 = vmatprep.subr.bf16.mxu0 0
    %2065 = vmatpush2.bf16.msra.mxu0 0
    %2066 = vmatprep.mubr.bf16.mxu0 0
    %2067 = vmatmul.mubr.bf16.gmra.mxu0 %v1828
    %v2068 = vpop.f32.mrf.mxu0
    %v2069 = vadd.f32 0.0, %v2068
    %v2070 = vpop.f32.mrf.mxu0
    %v2071 = vadd.f32 0.0, %v2070
    %v2072 = vpop.f32.mrf.mxu0
    %v2073 = vpop.f32.mrf.mxu0
    %2074 = vdwg.mxu0
    %2075 = vmatprep.subr.bf16.mxu0 %v790
    %2076 = vmatpush1.bf16.msra.mxu0 %v789
    %2077 = vmatprep.subr.bf16.mxu0 %v774
    %2078 = vmatpush1.bf16.msra.mxu0 %v773
    %2079 = vmatprep.subr.bf16.mxu0 %v758
    %2080 = vmatpush1.bf16.msra.mxu0 %v757
    %2081 = vmatprep.subr.bf16.mxu0 %v742
    %2082 = vmatpush1.bf16.msra.mxu0 %v741
    %2083 = vmatprep.subr.bf16.mxu0 %v726
    %2084 = vmatpush1.bf16.msra.mxu0 %v725
    %2085 = vmatprep.subr.bf16.mxu0 %v710
    %2086 = vmatpush1.bf16.msra.mxu0 %v709
    %2087 = vmatprep.subr.bf16.mxu0 %v694
    %2088 = vmatpush1.bf16.msra.mxu0 %v693
    %2089 = vmatprep.subr.bf16.mxu0 %v678
    %2090 = vmatpush1.bf16.msra.mxu0 %v677
    %2091 = vmatprep.subr.bf16.mxu0 0
    %2092 = vmatpush2.bf16.msra.mxu0 0
    %2093 = vmatprep.subr.bf16.mxu0 0
    %2094 = vmatpush2.bf16.msra.mxu0 0
    %2095 = vmatprep.subr.bf16.mxu0 0
    %2096 = vmatpush2.bf16.msra.mxu0 0
    %2097 = vmatprep.subr.bf16.mxu0 0
    %2098 = vmatpush2.bf16.msra.mxu0 0
    %2099 = vmatprep.subr.bf16.mxu0 0
    %2100 = vmatpush2.bf16.msra.mxu0 0
    %2101 = vmatprep.subr.bf16.mxu0 0
    %2102 = vmatpush2.bf16.msra.mxu0 0
    %2103 = vmatprep.subr.bf16.mxu0 0
    %2104 = vmatpush2.bf16.msra.mxu0 0
    %2105 = vmatprep.subr.bf16.mxu0 0
    %2106 = vmatpush2.bf16.msra.mxu0 0
    %2107 = vmatprep.mubr.bf16.mxu0 0
    %2108 = vmatmul.mubr.bf16.gmra.mxu0 %v1828
    %v2109 = vpop.f32.mrf.mxu0
    %v2110 = vadd.f32 0.0, %v2109
    %v2111 = vpop.f32.mrf.mxu0
    %v2112 = vadd.f32 0.0, %v2111
    %v2113 = vpop.f32.mrf.mxu0
    %v2114 = vpop.f32.mrf.mxu0
    %2115 = vdwg.mxu0
    %2116 = vmatprep.subr.bf16.mxu0 %v792
    %2117 = vmatpush1.bf16.msra.mxu0 %v791
    %2118 = vmatprep.subr.bf16.mxu0 %v776
    %2119 = vmatpush1.bf16.msra.mxu0 %v775
    %2120 = vmatprep.subr.bf16.mxu0 %v760
    %2121 = vmatpush1.bf16.msra.mxu0 %v759
    %2122 = vmatprep.subr.bf16.mxu0 %v744
    %2123 = vmatpush1.bf16.msra.mxu0 %v743
    %2124 = vmatprep.subr.bf16.mxu0 %v728
    %2125 = vmatpush1.bf16.msra.mxu0 %v727
    %2126 = vmatprep.subr.bf16.mxu0 %v712
    %2127 = vmatpush1.bf16.msra.mxu0 %v711
    %2128 = vmatprep.subr.bf16.mxu0 %v696
    %2129 = vmatpush1.bf16.msra.mxu0 %v695
    %2130 = vmatprep.subr.bf16.mxu0 %v680
    %2131 = vmatpush1.bf16.msra.mxu0 %v679
    %2132 = vmatprep.subr.bf16.mxu0 0
    %2133 = vmatpush2.bf16.msra.mxu0 0
    %2134 = vmatprep.subr.bf16.mxu0 0
    %2135 = vmatpush2.bf16.msra.mxu0 0
    %2136 = vmatprep.subr.bf16.mxu0 0
    %2137 = vmatpush2.bf16.msra.mxu0 0
    %2138 = vmatprep.subr.bf16.mxu0 0
    %2139 = vmatpush2.bf16.msra.mxu0 0
    %2140 = vmatprep.subr.bf16.mxu0 0
    %2141 = vmatpush2.bf16.msra.mxu0 0
    %2142 = vmatprep.subr.bf16.mxu0 0
    %2143 = vmatpush2.bf16.msra.mxu0 0
    %2144 = vmatprep.subr.bf16.mxu0 0
    %2145 = vmatpush2.bf16.msra.mxu0 0
    %2146 = vmatprep.subr.bf16.mxu0 0
    %2147 = vmatpush2.bf16.msra.mxu0 0
    %2148 = vmatprep.mubr.bf16.mxu0 0
    %2149 = vmatmul.mubr.bf16.gmra.mxu0 %v1828
    %v2150 = vpop.f32.mrf.mxu0
    %v2151 = vadd.f32 0.0, %v2150
    %v2152 = vpop.f32.mrf.mxu0
    %v2153 = vadd.f32 0.0, %v2152
    %v2154 = vpop.f32.mrf.mxu0
    %v2155 = vpop.f32.mrf.mxu0
    %2156 = vdwg.mxu0
    %v2157 = vlaneseq
    %v2158 = vshrl.u32 %v2157, 7
    %v2159 = vsub.s32 0, %v2158
    %v2160 = vrot.slane %v1709, %v2159
    %v2161 = vmul.f32 %v1864, %v2160
    %v2162 = vmul.f32 %v1866, %v2160
    %v2163 = vmul.f32 %v1905, %v2160
    %v2164 = vmul.f32 %v1907, %v2160
    %v2165 = vmul.f32 %v1946, %v2160
    %v2166 = vmul.f32 %v1948, %v2160
    %v2167 = vmul.f32 %v1987, %v2160
    %v2168 = vmul.f32 %v1989, %v2160
    %v2169 = vmul.f32 %v2028, %v2160
    %v2170 = vmul.f32 %v2030, %v2160
    %v2171 = vmul.f32 %v2069, %v2160
    %v2172 = vmul.f32 %v2071, %v2160
    %v2173 = vmul.f32 %v2110, %v2160
    %v2174 = vmul.f32 %v2112, %v2160
    %v2175 = vmul.f32 %v2151, %v2160
    %v2176 = vmul.f32 %v2153, %v2160
    %v2177 = vld [vmem:[%s3] sm:$0xff]
    %v2178 = vld [vmem:[%s3 + $0x8] sm:$0xff]
    %v2181 = vlaneseq
    %v2182 = vshrl.u32 %v2181, 7
    %v2183 = vsub.s32 0, %v2182
    %v2184 = vrot.slane %v2177, %v2183
    %v2185 = vlaneseq
    %v2186 = vshrl.u32 %v2185, 7
    %v2187 = vsub.s32 1, %v2186
    %v2188 = vrot.slane %v2177, %v2187
    %v2189 = vlaneseq
    %v2190 = vshrl.u32 %v2189, 7
    %v2191 = vsub.s32 2, %v2190
    %v2192 = vrot.slane %v2177, %v2191
    %v2193 = vlaneseq
    %v2194 = vshrl.u32 %v2193, 7
    %v2195 = vsub.s32 3, %v2194
    %v2196 = vrot.slane %v2177, %v2195
    %v2197 = vlaneseq
    %v2198 = vshrl.u32 %v2197, 7
    %v2199 = vsub.s32 4, %v2198
    %v2200 = vrot.slane %v2177, %v2199
    %v2201 = vlaneseq
    %v2202 = vshrl.u32 %v2201, 7
    %v2203 = vsub.s32 5, %v2202
    %v2204 = vrot.slane %v2177, %v2203
    %v2205 = vlaneseq
    %v2206 = vshrl.u32 %v2205, 7
    %v2207 = vsub.s32 6, %v2206
    %v2208 = vrot.slane %v2177, %v2207
    %v2209 = vlaneseq
    %v2210 = vshrl.u32 %v2209, 7
    %v2211 = vsub.s32 7, %v2210
    %v2212 = vrot.slane %v2177, %v2211
    %v2213 = vlaneseq
    %v2214 = vshrl.u32 %v2213, 7
    %v2215 = vsub.s32 0, %v2214
    %v2216 = vrot.slane %v2178, %v2215
    %v2217 = vlaneseq
    %v2218 = vshrl.u32 %v2217, 7
    %v2219 = vsub.s32 1, %v2218
    %v2220 = vrot.slane %v2178, %v2219
    %v2221 = vlaneseq
    %v2222 = vshrl.u32 %v2221, 7
    %v2223 = vsub.s32 2, %v2222
    %v2224 = vrot.slane %v2178, %v2223
    %v2225 = vlaneseq
    %v2226 = vshrl.u32 %v2225, 7
    %v2227 = vsub.s32 3, %v2226
    %v2228 = vrot.slane %v2178, %v2227
    %v2229 = vlaneseq
    %v2230 = vshrl.u32 %v2229, 7
    %v2231 = vsub.s32 4, %v2230
    %v2232 = vrot.slane %v2178, %v2231
    %v2233 = vlaneseq
    %v2234 = vshrl.u32 %v2233, 7
    %v2235 = vsub.s32 5, %v2234
    %v2236 = vrot.slane %v2178, %v2235
    %v2237 = vlaneseq
    %v2238 = vshrl.u32 %v2237, 7
    %v2239 = vsub.s32 6, %v2238
    %v2240 = vrot.slane %v2178, %v2239
    %v2241 = vlaneseq
    %v2242 = vshrl.u32 %v2241, 7
    %v2243 = vsub.s32 7, %v2242
    %v2244 = vrot.slane %v2178, %v2243
    %v2261 = vadd.f32 %v2161, %v2184
    %v2262 = vadd.f32 %v2162, %v2188
    %v2263 = vadd.f32 %v2163, %v2192
    %v2264 = vadd.f32 %v2164, %v2196
    %v2265 = vadd.f32 %v2165, %v2200
    %v2266 = vadd.f32 %v2166, %v2204
    %v2267 = vadd.f32 %v2167, %v2208
    %v2268 = vadd.f32 %v2168, %v2212
    %v2269 = vadd.f32 %v2169, %v2216
    %v2270 = vadd.f32 %v2170, %v2220
    %v2271 = vadd.f32 %v2171, %v2224
    %v2272 = vadd.f32 %v2172, %v2228
    %v2273 = vadd.f32 %v2173, %v2232
    %v2274 = vadd.f32 %v2174, %v2236
    %v2275 = vadd.f32 %v2175, %v2240
    %v2276 = vadd.f32 %v2176, %v2244
    %2277 = vst [vmem:[%s4] sm:$0xff] %v2261
    %2278 = vst [vmem:[%s4 + $0x8] sm:$0xff] %v2262
    %2279 = vst [vmem:[%s4 + $0x10] sm:$0xff] %v2263
    %2280 = vst [vmem:[%s4 + $0x18] sm:$0xff] %v2264
    %2281 = vst [vmem:[%s4 + $0x20] sm:$0xff] %v2265
    %2282 = vst [vmem:[%s4 + $0x28] sm:$0xff] %v2266
    %2283 = vst [vmem:[%s4 + $0x30] sm:$0xff] %v2267
    %2284 = vst [vmem:[%s4 + $0x38] sm:$0xff] %v2268
    %2285 = vst [vmem:[%s4 + $0x40] sm:$0xff] %v2269
    %2286 = vst [vmem:[%s4 + $0x48] sm:$0xff] %v2270
    %2287 = vst [vmem:[%s4 + $0x50] sm:$0xff] %v2271
    %2288 = vst [vmem:[%s4 + $0x58] sm:$0xff] %v2272
    %2289 = vst [vmem:[%s4 + $0x60] sm:$0xff] %v2273
    %2290 = vst [vmem:[%s4 + $0x68] sm:$0xff] %v2274
    %2291 = vst [vmem:[%s4 + $0x70] sm:$0xff] %v2275
    %2292 = vst [vmem:[%s4 + $0x78] sm:$0xff] %v2276
    // Predicated region
    $region22: #{_gen_ini_block_forward.1} parent=1 // pred_check
      _
    $region23: #{_gen_ini_block_forward.1} parent=1 // pred_check_branch
      %2294 = sbr.rel (0) target = $region25
    $region24: #{_gen_ini_block_forward.1} parent=1 // pred_region
      _
    $region25: #{_gen_ini_block_forward.1} parent=1 // pred_fallthru
      _
    // Predicated region
    $region26: #{_gen_ini_block_forward.1} parent=1 // pred_check
      _
    $region27: #{_gen_ini_block_forward.1} parent=1 // pred_check_branch
      %2296 = sbr.rel (0) target = $region29
    $region28: #{_gen_ini_block_forward.1} parent=1 // pred_region
      %s2298 = ssub.s32 256, 256
      %2299 = vsyncadd [#allocation4], %s2298
      %s2301 = sshll.u32 [#allocation5], 4
      %s2302 = int_to_ptr.vmem [resolvable:$true] %s2301
      %2304 = dma.vmem_to_hbm [thread:$0]  %s2302, 256, %s5, [#allocation4]
    $region29: #{_gen_ini_block_forward.1} parent=1 // pred_fallthru
      _
    // Predicated region
    $region30: #{_gen_ini_block_forward.1} parent=1 // pred_check
      _
    $region31: #{_gen_ini_block_forward.1} parent=1 // pred_check_branch
      %2306 = sbr.rel (0) target = $region33
    $region32: #{_gen_ini_block_forward.1} parent=1 // pred_region
      _
    $region33: #{_gen_ini_block_forward.1} parent=1 // pred_fallthru
      _
    // Predicated region
    $region34: #{_gen_ini_block_forward.1} parent=1 // pred_check
      _
    $region35: #{_gen_ini_block_forward.1} parent=1 // pred_check_branch
      %2308 = sbr.rel (0) target = $region37
    $region36: #{_gen_ini_block_forward.1} parent=1 // pred_region
      %2309 = dma.done [#allocation4], 256
    $region37: #{_gen_ini_block_forward.1} parent=1 // pred_fallthru
      _
    %2310 = vsyncpa [#allocation3], 1
    %2311 = vsyncpa [#allocation4], 1

</llo_original>
